<compile_context>
chip_gen: v7x
topology: tpu7x:2x2x1
jax: 0.10.0
libtpu: 0.0.40
codegen_flags: <defaults>
</compile_context>

<pallas_src>
import functools

import jax
import jax.numpy as jnp
from jax.experimental import pallas as pl
from jax.experimental.pallas import tpu as pltpu

INPUT_DIM = 768
HIDDEN_DIM = 1024
OUT_DIM = 1


def aesthetic_mlp_kernel(x_ref, w1_ref, b1_ref, w2_ref, b2_ref, o_ref, *, bf16_silu):
    # fc1: x @ W1 + b1 on the MXU; bf16 inputs, f32 accumulation.
    x = x_ref[...]
    if x.dtype != jnp.bfloat16:
        x = x.astype(jnp.bfloat16)
    h = jnp.dot(x, w1_ref[...], preferred_element_type=jnp.float32)
    h = h + b1_ref[...]                       # b1 broadcast over batch rows

    # SiLU. Sigmoid in bf16 on chips with a bf16 EUP (v6e/v7x), f32 otherwise.
    if bf16_silu:
        s = jax.nn.sigmoid(h.astype(jnp.bfloat16)).astype(jnp.float32)
    else:
        s = jax.nn.sigmoid(h)
    h = h * s                                 # multiply stays f32

    # dropout1 (p=0.5) -> identity at inference.
    # fc2 (output dim = 1): VPU broadcast-multiply + cross-lane reduction, f32.
    out = jnp.sum(h * w2_ref[...], axis=-1, keepdims=True)
    o_ref[...] = out + b2_ref[...]


def _bf16_silu_supported():
    """bf16 EUP exists on v6e/v7x; keep f32 sigmoid on v5e and older."""
    try:
        kind = jax.devices()[0].device_kind.lower()
    except Exception:
        return False
    return any(tag in kind for tag in ("v6", "v7", "7x"))


def _pick_batch_tile(B):
    """Fixed-size tiles + cdiv grid; ragged last tile handled by block clipping."""
    cap = 512 if B >= 1024 else 256
    if B > cap:
        return cap
    if B >= 16:
        # Guarantee >= 2 grid steps so v7x can shard across its 2 TensorCores.
        half = pl.cdiv(B, 2)
        return ((half + 7) // 8) * 8          # multiple of 8 (sublane constraint)
    # Tiny batch: single step; tile == full batch dim satisfies the BlockSpec rule.
    return max(B, 1)


def prepare_params(w1, b1, w2, b2):
    """One-time param conversion (keep OUT of the per-call hot path)."""
    w1_bf16 = jnp.asarray(w1, jnp.bfloat16)                       # (768, 1024)
    b1_row = jnp.asarray(b1, jnp.float32).reshape(1, HIDDEN_DIM)  # (1, 1024)
    w2_row = jnp.asarray(w2, jnp.float32).reshape(1, HIDDEN_DIM)  # (1024,1)->(1,1024)
    b2_row = jnp.asarray(b2, jnp.float32).reshape(1, OUT_DIM)     # (1, 1)
    return w1_bf16, b1_row, w2_row, b2_row


def aesthetic_model_forward(x, params, *, batch_tile=None, bf16_silu=None,
                            training=False):
    if training:
        raise NotImplementedError(
            "Training-mode Dropout1d(0.5) is not implemented in this kernel.")
    w1_bf16, b1_row, w2_row, b2_row = params
    B, D = x.shape
    assert D == INPUT_DIM
    if batch_tile is None:
        batch_tile = _pick_batch_tile(B)
    if bf16_silu is None:
        bf16_silu = _bf16_silu_supported()

    grid = (pl.cdiv(B, batch_tile),)

    cost = pl.CostEstimate(
        flops=2 * B * INPUT_DIM * HIDDEN_DIM + 3 * B * HIDDEN_DIM,
        transcendentals=B * HIDDEN_DIM,
        bytes_accessed=(x.size * x.dtype.itemsize
                        + w1_bf16.size * 2
                        + b1_row.size * 4 + w2_row.size * 4 + b2_row.size * 4
                        + B * OUT_DIM * 4),
    )

    kernel = functools.partial(aesthetic_mlp_kernel, bf16_silu=bool(bf16_silu))

    return pl.pallas_call(
        kernel,
        out_shape=jax.ShapeDtypeStruct((B, OUT_DIM), jnp.float32),
        grid_spec=pltpu.PrefetchScalarGridSpec(
            num_scalar_prefetch=0,
            grid=grid,
            in_specs=[
                # x: tile over batch only; full feature dim in VMEM.
                pl.BlockSpec((batch_tile, INPUT_DIM), lambda i: (i, 0)),
                # weights/biases: whole arrays, same block for every grid step.
                pl.BlockSpec((INPUT_DIM, HIDDEN_DIM), lambda i: (0, 0)),
                pl.BlockSpec((1, HIDDEN_DIM), lambda i: (0, 0)),
                pl.BlockSpec((1, HIDDEN_DIM), lambda i: (0, 0)),
                pl.BlockSpec((1, OUT_DIM), lambda i: (0, 0)),
            ],
            out_specs=pl.BlockSpec((batch_tile, OUT_DIM), lambda i: (i, 0)),
        ),
        compiler_params=pltpu.CompilerParams(
            dimension_semantics=("parallel",),
        ),
        cost_estimate=cost,
    )(x, w1_bf16, b1_row, w2_row, b2_row)


def init_params(key):
    k1, k2, k3, k4 = jax.random.split(key, 4)
    # Deterministic synthetic init (roughly Kaiming-uniform-like scaling).
    w1 = jax.random.uniform(
        k1, (INPUT_DIM, HIDDEN_DIM), jnp.float32, -1.0, 1.0
    ) / jnp.sqrt(INPUT_DIM)
    b1 = jax.random.uniform(k2, (HIDDEN_DIM,), jnp.float32, -1.0, 1.0) / jnp.sqrt(INPUT_DIM)
    w2 = jax.random.uniform(
        k3, (HIDDEN_DIM, OUT_DIM), jnp.float32, -1.0, 1.0
    ) / jnp.sqrt(HIDDEN_DIM)
    b2 = jax.random.uniform(k4, (OUT_DIM,), jnp.float32, -1.0, 1.0) / jnp.sqrt(HIDDEN_DIM)
    return w1, b1, w2, b2


def reference_forward_f32(x, w1, b1, w2, b2):
    h = x @ w1 + b1
    h = h * jax.nn.sigmoid(h)  # SiLU
    return h @ w2 + b2


def reference_forward_matched(x_bf16, w1, b1, w2, b2, *, bf16_silu):
    # Same quantization recipe as the kernel (bf16 fc1 inputs, f32 accumulation,
    # optional bf16 sigmoid, f32 fc2 reduction).
    h = jnp.dot(x_bf16.astype(jnp.bfloat16), w1.astype(jnp.bfloat16),
                preferred_element_type=jnp.float32) + b1
    if bf16_silu:
        s = jax.nn.sigmoid(h.astype(jnp.bfloat16)).astype(jnp.float32)
    else:
        s = jax.nn.sigmoid(h)
    h = h * s
    return (jnp.sum(h * w2.reshape(1, HIDDEN_DIM), axis=-1, keepdims=True)
            + b2.reshape(1, OUT_DIM))


if __name__ == "__main__":
    key = jax.random.PRNGKey(0)
    kx1, kx2, kp = jax.random.split(key, 3)

    w1, b1, w2, b2 = init_params(kp)
    params = prepare_params(w1, b1, w2, b2)      # one-time bf16/reshape prep
    bf16_silu = _bf16_silu_supported()

    fwd = jax.jit(aesthetic_model_forward,
                  static_argnames=("batch_tile", "bf16_silu", "training"))

    # --- small even batch (single tile) ---
    B = 8
    x_f32 = jax.random.normal(kx1, (B, INPUT_DIM), dtype=jnp.float32)
    x_bf16 = x_f32.astype(jnp.bfloat16)          # upstream producer emits bf16
    out = jax.block_until_ready(fwd(x_bf16, params))
    assert out.shape == (B, OUT_DIM)

    ref_m = reference_forward_matched(x_bf16, w1, b1, w2, b2, bf16_silu=bf16_silu)
    assert jnp.allclose(out, ref_m, atol=1e-2, rtol=1e-2), "mismatch vs matched ref"

    ref_f = reference_forward_f32(x_f32, w1, b1, w2, b2)
    assert jnp.allclose(out, ref_f, atol=5e-2, rtol=5e-2), "mismatch vs f32 reference"

    # --- ragged batch: exercises the cdiv grid (2 steps, clipped last block) ---
    B2 = 20
    x2 = jax.random.normal(kx2, (B2, INPUT_DIM), dtype=jnp.float32).astype(jnp.bfloat16)
    out2 = jax.block_until_ready(fwd(x2, params))
    assert out2.shape == (B2, OUT_DIM)
    ref2 = reference_forward_matched(x2, w1, b1, w2, b2, bf16_silu=bf16_silu)
    assert jnp.allclose(out2, ref2, atol=1e-2, rtol=1e-2), "mismatch on ragged batch"

    print("KERNEL_OK")
</pallas_src>

<mosaic_0001>
module attributes {stable_mosaic.version = 11 : i64} {
  func.func @aesthetic_mlp_kernel(%arg0: i32, %arg1: memref<8x768xbf16, #tpu.memory_space<vmem>>, %arg2: memref<768x1024xbf16, #tpu.memory_space<vmem>>, %arg3: memref<1x1024xf32, #tpu.memory_space<vmem>>, %arg4: memref<1x1024xf32, #tpu.memory_space<vmem>>, %arg5: memref<1x1xf32, #tpu.memory_space<vmem>>, %arg6: memref<8x1xf32, #tpu.memory_space<vmem>>) attributes {dimension_semantics = [#tpu.dimension_semantics<parallel>], iteration_bounds = array<i64: 1>, scalar_prefetch = 0 : i64, scratch_operands = 0 : i64, tpu.core_type = #tpu.core_type<tc>, window_params = [{transform_indices = @transform_0, window_bounds = array<i64: 8, 768>}, {pipeline_mode = #tpu.pipeline_mode<synchronous>, transform_indices = @transform_1, window_bounds = array<i64: 768, 1024>}, {pipeline_mode = #tpu.pipeline_mode<synchronous>, transform_indices = @transform_2, window_bounds = array<i64: 1, 1024>}, {pipeline_mode = #tpu.pipeline_mode<synchronous>, transform_indices = @transform_3, window_bounds = array<i64: 1, 1024>}, {pipeline_mode = #tpu.pipeline_mode<synchronous>, transform_indices = @transform_4, window_bounds = array<i64: 1, 1>}, {transform_indices = @transform_5, window_bounds = array<i64: 8, 1>}]} {
    %c0 = arith.constant 0 : index
    %c0_0 = arith.constant 0 : index
    %0 = vector.load %arg1[%c0, %c0_0] : memref<8x768xbf16, #tpu.memory_space<vmem>>, vector<8x768xbf16>
    %c0_1 = arith.constant 0 : index
    %c0_2 = arith.constant 0 : index
    %1 = vector.load %arg2[%c0_1, %c0_2] : memref<768x1024xbf16, #tpu.memory_space<vmem>>, vector<768x1024xbf16>
    %cst = arith.constant dense<0.000000e+00> : vector<8x1024xf32>
    %2 = tpu.matmul %0, %1, %cst {dimension_numbers = #tpu.dot_dimension_numbers<[1], [0], [0], [1], [0, 0, 1, 1], [], []>} : vector<8x768xbf16>, vector<768x1024xbf16>, vector<8x1024xf32> -> vector<8x1024xf32>
    %c0_3 = arith.constant 0 : index
    %c0_4 = arith.constant 0 : index
    %3 = vector.load %arg3[%c0_3, %c0_4] : memref<1x1024xf32, #tpu.memory_space<vmem>>, vector<1x1024xf32>
    %4 = vector.broadcast %3 : vector<1x1024xf32> to vector<8x1024xf32>
    %5 = arith.addf %2, %4 : vector<8x1024xf32>
    %6 = arith.negf %5 : vector<8x1024xf32>
    %7 = math.exp %6 : vector<8x1024xf32>
    %cst_5 = arith.constant 1.000000e+00 : f32
    %8 = vector.broadcast %cst_5 : f32 to vector<8x1024xf32>
    %9 = arith.addf %8, %7 : vector<8x1024xf32>
    %10 = arith.divf %8, %9 : vector<8x1024xf32>
    %11 = arith.mulf %5, %10 : vector<8x1024xf32>
    %c0_6 = arith.constant 0 : index
    %c0_7 = arith.constant 0 : index
    %12 = vector.load %arg4[%c0_6, %c0_7] : memref<1x1024xf32, #tpu.memory_space<vmem>>, vector<1x1024xf32>
    %13 = vector.broadcast %12 : vector<1x1024xf32> to vector<8x1024xf32>
    %14 = arith.mulf %11, %13 : vector<8x1024xf32>
    %cst_8 = arith.constant dense<0.000000e+00> : vector<8xf32>
    %15 = vector.multi_reduction <add>, %14, %cst_8 [1] : vector<8x1024xf32> to vector<8xf32>
    %16 = vector.shape_cast %15 : vector<8xf32> to vector<8x1xf32>
    %c0_9 = arith.constant 0 : index
    %c0_10 = arith.constant 0 : index
    %17 = vector.load %arg5[%c0_9, %c0_10] : memref<1x1xf32, #tpu.memory_space<vmem>>, vector<1x1xf32>
    %18 = vector.broadcast %17 : vector<1x1xf32> to vector<8x1xf32>
    %19 = arith.addf %16, %18 : vector<8x1xf32>
    %c0_11 = arith.constant 0 : index
    %c0_12 = arith.constant 0 : index
    %20 = vector.load %arg6[%c0_11, %c0_12] : memref<8x1xf32, #tpu.memory_space<vmem>>, vector<8x1xf32>
    tpu.vector_store %arg6[%c0_11, %c0_12], %19 {strides = array<i32>} : memref<8x1xf32, #tpu.memory_space<vmem>>, vector<8x1xf32>,
    return
  }
  func.func @transform_0(%arg0: i32) -> (i32, i32) {
    %c0_i32 = arith.constant 0 : i32
    %c0_i32_0 = arith.constant 0 : i32
    return %arg0, %c0_i32 : i32, i32
  }
  func.func @transform_1(%arg0: i32) -> (i32, i32) {
    %c0_i32 = arith.constant 0 : i32
    %c0_i32_0 = arith.constant 0 : i32
    %c0_i32_1 = arith.constant 0 : i32
    return %c0_i32, %c0_i32_0 : i32, i32
  }
  func.func @transform_2(%arg0: i32) -> (i32, i32) {
    %c0_i32 = arith.constant 0 : i32
    %c0_i32_0 = arith.constant 0 : i32
    %c0_i32_1 = arith.constant 0 : i32
    return %c0_i32, %c0_i32_0 : i32, i32
  }
  func.func @transform_3(%arg0: i32) -> (i32, i32) {
    %c0_i32 = arith.constant 0 : i32
    %c0_i32_0 = arith.constant 0 : i32
    %c0_i32_1 = arith.constant 0 : i32
    return %c0_i32, %c0_i32_0 : i32, i32
  }
  func.func @transform_4(%arg0: i32) -> (i32, i32) {
    %c0_i32 = arith.constant 0 : i32
    %c0_i32_0 = arith.constant 0 : i32
    %c0_i32_1 = arith.constant 0 : i32
    return %c0_i32, %c0_i32_0 : i32, i32
  }
  func.func @transform_5(%arg0: i32) -> (i32, i32) {
    %c0_i32 = arith.constant 0 : i32
    %c0_i32_0 = arith.constant 0 : i32
    return %arg0, %c0_i32 : i32, i32
  }
}

</mosaic_0001>

<llo_original>
// kernel: aesthetic_model_forward.1
$region0: #{aesthetic_model_forward.1}
  #allocation0 [shape = 'u32[]', space=smem, size = 0x4, offset = 0x4, fixed_abs, tag = 'smem constant byte address 0x4 - core index']
  #allocation1 [shape = 'u32[144,128]{1,0:T(1,128)}', space=vmem, size = 0x12000, scoped, tag = 'internal scratch']
  #allocation2 [shape = 'f32[1,1]{1,0:T(1,128)S(1)}', space=vmem, size = 0x200, scoped, tag = 'scoped memory for aesthetic_model_forward.1']
  %s0 = inlined_call_operand.hbm [shape: bf16[8,768], index: 0, kind: input, shape index: {}]
  %s1 = inlined_call_operand.hbm [shape: bf16[768,1024], index: 1, kind: input, shape index: {}]
  %s2 = inlined_call_operand.hbm [shape: f32[1,1024], index: 2, kind: input, shape index: {}]
  %s3 = inlined_call_operand.hbm [shape: f32[1,1024], index: 3, kind: input, shape index: {}]
  %s4 = inlined_call_operand.<no memory space> [shape: f32[1,1], index: 4, kind: input, shape index: {}]
  %s5 = inlined_call_operand.vmem [shape: f32[8,1], index: 5, kind: output, shape index: {}]
  %s6 = sld [smem:[#allocation0]]
  $region46: #{aesthetic_model_forward.1} parent=0
    _
  %s8 = ssub.s32 1, %s6
  %s9 = scalar_select 0, %s8, %s6
  %v10 = vstv %s4
  %11 = vst [vmem:[#allocation2] sm:$0x1] %v10
  $region1: #{aesthetic_model_forward.1} parent=0
    #allocation3 [shape = 'u8[12288]{0}', space=vmem, size = 0x3000, scoped, tag = 'input window, operand 0, single buffered']
    #allocation4 [shape = 's32[1]{0}', space=sflag, size = 0x4, scoped, tag = 'scoped memory for aesthetic_model_forward.1']
    #allocation5 [shape = 'u8[1572864]{0}', space=vmem, size = 0x180000, scoped, tag = 'input window, operand 1, single buffered']
    #allocation6 [shape = 's32[1]{0}', space=sflag, size = 0x4, scoped, tag = 'scoped memory for aesthetic_model_forward.1']
    #allocation7 [shape = 'u8[4096]{0}', space=vmem, size = 0x1000, scoped, tag = 'input window, operand 2, single buffered']
    #allocation8 [shape = 'u8[4096]{0}', space=vmem, size = 0x1000, scoped, tag = 'input window, operand 3, single buffered']
    #allocation9 [shape = 's32[1]{0}', space=sflag, size = 0x4, scoped, tag = 'scoped memory for aesthetic_model_forward.1']
    %12 = vsyncpa [#allocation4], 0
    %13 = vsyncpa [#allocation6], 0
    %14 = vsyncpa [#allocation9], 0
    // Predicated region
    $region2: #{aesthetic_model_forward.1} parent=1 // pred_check
      _
    $region3: #{aesthetic_model_forward.1} parent=1 // pred_check_branch
      %16 = sbr.rel (0) target = $region5
    $region4: #{aesthetic_model_forward.1} parent=1 // pred_region
      %s18 = ssub.s32 384, 384
      %19 = vsyncadd [#allocation4], %s18
      %s21 = sshll.u32 [#allocation3], 4
      %s22 = int_to_ptr.vmem [resolvable:$true] %s21
      %24 = dma.hbm_to_vmem [thread:$0]  %s0, 384, %s22, [#allocation4]
    $region5: #{aesthetic_model_forward.1} parent=1 // pred_fallthru
      _
    // Predicated region
    $region6: #{aesthetic_model_forward.1} parent=1 // pred_check
      _
    $region7: #{aesthetic_model_forward.1} parent=1 // pred_check_branch
      %26 = sbr.rel (0) target = $region9
    $region8: #{aesthetic_model_forward.1} parent=1 // pred_region
      %s28 = ssub.s32 49152, 49152
      %29 = vsyncadd [#allocation6], %s28
      %s30 = sshll.u32 [#allocation5], 4
      %s31 = int_to_ptr.vmem [resolvable:$true] %s30
      %36 = dma.hbm_to_vmem [thread:$0]  %s1, 49152, %s31, [#allocation6], 512, 512, 32
    $region9: #{aesthetic_model_forward.1} parent=1 // pred_fallthru
      _
    // Predicated region
    $region10: #{aesthetic_model_forward.1} parent=1 // pred_check
      _
    $region11: #{aesthetic_model_forward.1} parent=1 // pred_check_branch
      %38 = sbr.rel (0) target = $region13
    $region12: #{aesthetic_model_forward.1} parent=1 // pred_region
      %s40 = ssub.s32 128, 128
      %41 = vsyncadd [#allocation6], %s40
      %s43 = sshll.u32 [#allocation7], 4
      %s44 = int_to_ptr.vmem [resolvable:$true] %s43
      %46 = dma.hbm_to_vmem [thread:$0]  %s2, 128, %s44, [#allocation6]
    $region13: #{aesthetic_model_forward.1} parent=1 // pred_fallthru
      _
    // Predicated region
    $region14: #{aesthetic_model_forward.1} parent=1 // pred_check
      _
    $region15: #{aesthetic_model_forward.1} parent=1 // pred_check_branch
      %48 = sbr.rel (0) target = $region17
    $region16: #{aesthetic_model_forward.1} parent=1 // pred_region
      %s50 = ssub.s32 128, 128
      %51 = vsyncadd [#allocation9], %s50
      %s53 = sshll.u32 [#allocation8], 4
      %s54 = int_to_ptr.vmem [resolvable:$true] %s53
      %56 = dma.hbm_to_vmem [thread:$0]  %s3, 128, %s54, [#allocation9]
    $region17: #{aesthetic_model_forward.1} parent=1 // pred_fallthru
      _
    // Predicated region
    $region18: #{aesthetic_model_forward.1} parent=1 // pred_check
      _
    $region19: #{aesthetic_model_forward.1} parent=1 // pred_check_branch
      %58 = sbr.rel (0) target = $region21
    $region20: #{aesthetic_model_forward.1} parent=1 // pred_region
      _
    $region21: #{aesthetic_model_forward.1} parent=1 // pred_fallthru
      _
    // Predicated region
    $region22: #{aesthetic_model_forward.1} parent=1 // pred_check
      _
    $region23: #{aesthetic_model_forward.1} parent=1 // pred_check_branch
      %60 = sbr.rel (0) target = $region25
    $region24: #{aesthetic_model_forward.1} parent=1 // pred_region
      %61 = dma.done [#allocation4], 384
    $region25: #{aesthetic_model_forward.1} parent=1 // pred_fallthru
      _
    // Predicated region
    $region26: #{aesthetic_model_forward.1} parent=1 // pred_check
      _
    $region27: #{aesthetic_model_forward.1} parent=1 // pred_check_branch
      %63 = sbr.rel (0) target = $region29
    $region28: #{aesthetic_model_forward.1} parent=1 // pred_region
      %64 = dma.done [#allocation6], 49152
    $region29: #{aesthetic_model_forward.1} parent=1 // pred_fallthru
      _
    // Predicated region
    $region30: #{aesthetic_model_forward.1} parent=1 // pred_check
      _
    $region31: #{aesthetic_model_forward.1} parent=1 // pred_check_branch
      %66 = sbr.rel (0) target = $region33
    $region32: #{aesthetic_model_forward.1} parent=1 // pred_region
      %67 = dma.done [#allocation6], 128
    $region33: #{aesthetic_model_forward.1} parent=1 // pred_fallthru
      _
    // Predicated region
    $region34: #{aesthetic_model_forward.1} parent=1 // pred_check
      _
    $region35: #{aesthetic_model_forward.1} parent=1 // pred_check_branch
      %69 = sbr.rel (0) target = $region37
    $region36: #{aesthetic_model_forward.1} parent=1 // pred_region
      %70 = dma.done [#allocation9], 128
    $region37: #{aesthetic_model_forward.1} parent=1 // pred_fallthru
      _
    %v71 = vld [vmem:[#allocation3] sm:$0xff]
    %v72 = vld [vmem:[#allocation3 + $0x8] sm:$0xff]
    %v73 = vld [vmem:[#allocation3 + $0x10] sm:$0xff]
    %v74 = vld [vmem:[#allocation5] sm:$0xff]
    %v75 = vld [vmem:[#allocation5 + $0x8] sm:$0xff]
    %v76 = vld [vmem:[#allocation5 + $0x10] sm:$0xff]
    %v77 = vld [vmem:[#allocation5 + $0x18] sm:$0xff]
    %v78 = vld [vmem:[#allocation5 + $0x20] sm:$0xff]
    %v79 = vld [vmem:[#allocation5 + $0x28] sm:$0xff]
    %v80 = vld [vmem:[#allocation5 + $0x30] sm:$0xff]
    %v81 = vld [vmem:[#allocation5 + $0x38] sm:$0xff]
    %v82 = vld [vmem:[#allocation5 + $0x40] sm:$0xff]
    %v83 = vld [vmem:[#allocation5 + $0x48] sm:$0xff]
    %v84 = vld [vmem:[#allocation5 + $0x50] sm:$0xff]
    %v85 = vld [vmem:[#allocation5 + $0x58] sm:$0xff]
    %v86 = vld [vmem:[#allocation5 + $0x60] sm:$0xff]
    %v87 = vld [vmem:[#allocation5 + $0x68] sm:$0xff]
    %v88 = vld [vmem:[#allocation5 + $0x70] sm:$0xff]
    %v89 = vld [vmem:[#allocation5 + $0x78] sm:$0xff]
    %v90 = vld [vmem:[#allocation5 + $0x80] sm:$0xff]
    %v91 = vld [vmem:[#allocation5 + $0x88] sm:$0xff]
    %v92 = vld [vmem:[#allocation5 + $0x90] sm:$0xff]
    %v93 = vld [vmem:[#allocation5 + $0x98] sm:$0xff]
    %v94 = vld [vmem:[#allocation5 + $0xa0] sm:$0xff]
    %v95 = vld [vmem:[#allocation5 + $0xa8] sm:$0xff]
    %v96 = vld [vmem:[#allocation5 + $0xb0] sm:$0xff]
    %v97 = vld [vmem:[#allocation5 + $0xb8] sm:$0xff]
    %v98 = vld [vmem:[#allocation5 + $0xc0] sm:$0xff]
    %v99 = vld [vmem:[#allocation5 + $0xc8] sm:$0xff]
    %v100 = vld [vmem:[#allocation5 + $0xd0] sm:$0xff]
    %v101 = vld [vmem:[#allocation5 + $0xd8] sm:$0xff]
    %v102 = vld [vmem:[#allocation5 + $0xe0] sm:$0xff]
    %v103 = vld [vmem:[#allocation5 + $0xe8] sm:$0xff]
    %v104 = vld [vmem:[#allocation5 + $0xf0] sm:$0xff]
    %v105 = vld [vmem:[#allocation5 + $0xf8] sm:$0xff]
    %v106 = vld [vmem:[#allocation5 + $0x100] sm:$0xff]
    %v107 = vld [vmem:[#allocation5 + $0x108] sm:$0xff]
    %v108 = vld [vmem:[#allocation5 + $0x110] sm:$0xff]
    %v109 = vld [vmem:[#allocation5 + $0x118] sm:$0xff]
    %v110 = vld [vmem:[#allocation5 + $0x120] sm:$0xff]
    %v111 = vld [vmem:[#allocation5 + $0x128] sm:$0xff]
    %v112 = vld [vmem:[#allocation5 + $0x130] sm:$0xff]
    %v113 = vld [vmem:[#allocation5 + $0x138] sm:$0xff]
    %v114 = vld [vmem:[#allocation5 + $0x140] sm:$0xff]
    %v115 = vld [vmem:[#allocation5 + $0x148] sm:$0xff]
    %v116 = vld [vmem:[#allocation5 + $0x150] sm:$0xff]
    %v117 = vld [vmem:[#allocation5 + $0x158] sm:$0xff]
    %v118 = vld [vmem:[#allocation5 + $0x160] sm:$0xff]
    %v119 = vld [vmem:[#allocation5 + $0x168] sm:$0xff]
    %v120 = vld [vmem:[#allocation5 + $0x170] sm:$0xff]
    %v121 = vld [vmem:[#allocation5 + $0x178] sm:$0xff]
    %v122 = vld [vmem:[#allocation5 + $0x180] sm:$0xff]
    %v123 = vld [vmem:[#allocation5 + $0x188] sm:$0xff]
    %v124 = vld [vmem:[#allocation5 + $0x190] sm:$0xff]
    %v125 = vld [vmem:[#allocation5 + $0x198] sm:$0xff]
    %v126 = vld [vmem:[#allocation5 + $0x1a0] sm:$0xff]
    %v127 = vld [vmem:[#allocation5 + $0x1a8] sm:$0xff]
    %v128 = vld [vmem:[#allocation5 + $0x1b0] sm:$0xff]
    %v129 = vld [vmem:[#allocation5 + $0x1b8] sm:$0xff]
    %v130 = vld [vmem:[#allocation5 + $0x1c0] sm:$0xff]
    %v131 = vld [vmem:[#allocation5 + $0x1c8] sm:$0xff]
    %v132 = vld [vmem:[#allocation5 + $0x1d0] sm:$0xff]
    %v133 = vld [vmem:[#allocation5 + $0x1d8] sm:$0xff]
    %v134 = vld [vmem:[#allocation5 + $0x1e0] sm:$0xff]
    %v135 = vld [vmem:[#allocation5 + $0x1e8] sm:$0xff]
    %v136 = vld [vmem:[#allocation5 + $0x1f0] sm:$0xff]
    %v137 = vld [vmem:[#allocation5 + $0x1f8] sm:$0xff]
    %v138 = vld [vmem:[#allocation5 + $0x200] sm:$0xff]
    %v139 = vld [vmem:[#allocation5 + $0x208] sm:$0xff]
    %v140 = vld [vmem:[#allocation5 + $0x210] sm:$0xff]
    %v141 = vld [vmem:[#allocation5 + $0x218] sm:$0xff]
    %v142 = vld [vmem:[#allocation5 + $0x220] sm:$0xff]
    %v143 = vld [vmem:[#allocation5 + $0x228] sm:$0xff]
    %v144 = vld [vmem:[#allocation5 + $0x230] sm:$0xff]
    %v145 = vld [vmem:[#allocation5 + $0x238] sm:$0xff]
    %v146 = vld [vmem:[#allocation5 + $0x240] sm:$0xff]
    %v147 = vld [vmem:[#allocation5 + $0x248] sm:$0xff]
    %v148 = vld [vmem:[#allocation5 + $0x250] sm:$0xff]
    %v149 = vld [vmem:[#allocation5 + $0x258] sm:$0xff]
    %v150 = vld [vmem:[#allocation5 + $0x260] sm:$0xff]
    %v151 = vld [vmem:[#allocation5 + $0x268] sm:$0xff]
    %v152 = vld [vmem:[#allocation5 + $0x270] sm:$0xff]
    %v153 = vld [vmem:[#allocation5 + $0x278] sm:$0xff]
    %v154 = vld [vmem:[#allocation5 + $0x280] sm:$0xff]
    %v155 = vld [vmem:[#allocation5 + $0x288] sm:$0xff]
    %v156 = vld [vmem:[#allocation5 + $0x290] sm:$0xff]
    %v157 = vld [vmem:[#allocation5 + $0x298] sm:$0xff]
    %v158 = vld [vmem:[#allocation5 + $0x2a0] sm:$0xff]
    %v159 = vld [vmem:[#allocation5 + $0x2a8] sm:$0xff]
    %v160 = vld [vmem:[#allocation5 + $0x2b0] sm:$0xff]
    %v161 = vld [vmem:[#allocation5 + $0x2b8] sm:$0xff]
    %v162 = vld [vmem:[#allocation5 + $0x2c0] sm:$0xff]
    %v163 = vld [vmem:[#allocation5 + $0x2c8] sm:$0xff]
    %v164 = vld [vmem:[#allocation5 + $0x2d0] sm:$0xff]
    %v165 = vld [vmem:[#allocation5 + $0x2d8] sm:$0xff]
    %v166 = vld [vmem:[#allocation5 + $0x2e0] sm:$0xff]
    %v167 = vld [vmem:[#allocation5 + $0x2e8] sm:$0xff]
    %v168 = vld [vmem:[#allocation5 + $0x2f0] sm:$0xff]
    %v169 = vld [vmem:[#allocation5 + $0x2f8] sm:$0xff]
    %v170 = vld [vmem:[#allocation5 + $0x300] sm:$0xff]
    %v171 = vld [vmem:[#allocation5 + $0x308] sm:$0xff]
    %v172 = vld [vmem:[#allocation5 + $0x310] sm:$0xff]
    %v173 = vld [vmem:[#allocation5 + $0x318] sm:$0xff]
    %v174 = vld [vmem:[#allocation5 + $0x320] sm:$0xff]
    %v175 = vld [vmem:[#allocation5 + $0x328] sm:$0xff]
    %v176 = vld [vmem:[#allocation5 + $0x330] sm:$0xff]
    %v177 = vld [vmem:[#allocation5 + $0x338] sm:$0xff]
    %v178 = vld [vmem:[#allocation5 + $0x340] sm:$0xff]
    %v179 = vld [vmem:[#allocation5 + $0x348] sm:$0xff]
    %v180 = vld [vmem:[#allocation5 + $0x350] sm:$0xff]
    %v181 = vld [vmem:[#allocation5 + $0x358] sm:$0xff]
    %v182 = vld [vmem:[#allocation5 + $0x360] sm:$0xff]
    %v183 = vld [vmem:[#allocation5 + $0x368] sm:$0xff]
    %v184 = vld [vmem:[#allocation5 + $0x370] sm:$0xff]
    %v185 = vld [vmem:[#allocation5 + $0x378] sm:$0xff]
    %v186 = vld [vmem:[#allocation5 + $0x380] sm:$0xff]
    %v187 = vld [vmem:[#allocation5 + $0x388] sm:$0xff]
    %v188 = vld [vmem:[#allocation5 + $0x390] sm:$0xff]
    %v189 = vld [vmem:[#allocation5 + $0x398] sm:$0xff]
    %v190 = vld [vmem:[#allocation5 + $0x3a0] sm:$0xff]
    %v191 = vld [vmem:[#allocation5 + $0x3a8] sm:$0xff]
    %v192 = vld [vmem:[#allocation5 + $0x3b0] sm:$0xff]
    %v193 = vld [vmem:[#allocation5 + $0x3b8] sm:$0xff]
    %v194 = vld [vmem:[#allocation5 + $0x3c0] sm:$0xff]
    %v195 = vld [vmem:[#allocation5 + $0x3c8] sm:$0xff]
    %v196 = vld [vmem:[#allocation5 + $0x3d0] sm:$0xff]
    %v197 = vld [vmem:[#allocation5 + $0x3d8] sm:$0xff]
    %v198 = vld [vmem:[#allocation5 + $0x3e0] sm:$0xff]
    %v199 = vld [vmem:[#allocation5 + $0x3e8] sm:$0xff]
    %v200 = vld [vmem:[#allocation5 + $0x3f0] sm:$0xff]
    %v201 = vld [vmem:[#allocation5 + $0x3f8] sm:$0xff]
    %v202 = vld [vmem:[#allocation5 + $0x400] sm:$0xff]
    %v203 = vld [vmem:[#allocation5 + $0x408] sm:$0xff]
    %v204 = vld [vmem:[#allocation5 + $0x410] sm:$0xff]
    %v205 = vld [vmem:[#allocation5 + $0x418] sm:$0xff]
    %v206 = vld [vmem:[#allocation5 + $0x420] sm:$0xff]
    %v207 = vld [vmem:[#allocation5 + $0x428] sm:$0xff]
    %v208 = vld [vmem:[#allocation5 + $0x430] sm:$0xff]
    %v209 = vld [vmem:[#allocation5 + $0x438] sm:$0xff]
    %v210 = vld [vmem:[#allocation5 + $0x440] sm:$0xff]
    %v211 = vld [vmem:[#allocation5 + $0x448] sm:$0xff]
    %v212 = vld [vmem:[#allocation5 + $0x450] sm:$0xff]
    %v213 = vld [vmem:[#allocation5 + $0x458] sm:$0xff]
    %v214 = vld [vmem:[#allocation5 + $0x460] sm:$0xff]
    %v215 = vld [vmem:[#allocation5 + $0x468] sm:$0xff]
    %v216 = vld [vmem:[#allocation5 + $0x470] sm:$0xff]
    %v217 = vld [vmem:[#allocation5 + $0x478] sm:$0xff]
    %v218 = vld [vmem:[#allocation5 + $0x480] sm:$0xff]
    %v219 = vld [vmem:[#allocation5 + $0x488] sm:$0xff]
    %v220 = vld [vmem:[#allocation5 + $0x490] sm:$0xff]
    %v221 = vld [vmem:[#allocation5 + $0x498] sm:$0xff]
    %v222 = vld [vmem:[#allocation5 + $0x4a0] sm:$0xff]
    %v223 = vld [vmem:[#allocation5 + $0x4a8] sm:$0xff]
    %v224 = vld [vmem:[#allocation5 + $0x4b0] sm:$0xff]
    %v225 = vld [vmem:[#allocation5 + $0x4b8] sm:$0xff]
    %v226 = vld [vmem:[#allocation5 + $0x4c0] sm:$0xff]
    %v227 = vld [vmem:[#allocation5 + $0x4c8] sm:$0xff]
    %v228 = vld [vmem:[#allocation5 + $0x4d0] sm:$0xff]
    %v229 = vld [vmem:[#allocation5 + $0x4d8] sm:$0xff]
    %v230 = vld [vmem:[#allocation5 + $0x4e0] sm:$0xff]
    %v231 = vld [vmem:[#allocation5 + $0x4e8] sm:$0xff]
    %v232 = vld [vmem:[#allocation5 + $0x4f0] sm:$0xff]
    %v233 = vld [vmem:[#allocation5 + $0x4f8] sm:$0xff]
    %v234 = vld [vmem:[#allocation5 + $0x500] sm:$0xff]
    %v235 = vld [vmem:[#allocation5 + $0x508] sm:$0xff]
    %v236 = vld [vmem:[#allocation5 + $0x510] sm:$0xff]
    %v237 = vld [vmem:[#allocation5 + $0x518] sm:$0xff]
    %v238 = vld [vmem:[#allocation5 + $0x520] sm:$0xff]
    %v239 = vld [vmem:[#allocation5 + $0x528] sm:$0xff]
    %v240 = vld [vmem:[#allocation5 + $0x530] sm:$0xff]
    %v241 = vld [vmem:[#allocation5 + $0x538] sm:$0xff]
    %v242 = vld [vmem:[#allocation5 + $0x540] sm:$0xff]
    %v243 = vld [vmem:[#allocation5 + $0x548] sm:$0xff]
    %v244 = vld [vmem:[#allocation5 + $0x550] sm:$0xff]
    %v245 = vld [vmem:[#allocation5 + $0x558] sm:$0xff]
    %v246 = vld [vmem:[#allocation5 + $0x560] sm:$0xff]
    %v247 = vld [vmem:[#allocation5 + $0x568] sm:$0xff]
    %v248 = vld [vmem:[#allocation5 + $0x570] sm:$0xff]
    %v249 = vld [vmem:[#allocation5 + $0x578] sm:$0xff]
    %v250 = vld [vmem:[#allocation5 + $0x580] sm:$0xff]
    %v251 = vld [vmem:[#allocation5 + $0x588] sm:$0xff]
    %v252 = vld [vmem:[#allocation5 + $0x590] sm:$0xff]
    %v253 = vld [vmem:[#allocation5 + $0x598] sm:$0xff]
    %v254 = vld [vmem:[#allocation5 + $0x5a0] sm:$0xff]
    %v255 = vld [vmem:[#allocation5 + $0x5a8] sm:$0xff]
    %v256 = vld [vmem:[#allocation5 + $0x5b0] sm:$0xff]
    %v257 = vld [vmem:[#allocation5 + $0x5b8] sm:$0xff]
    %v258 = vld [vmem:[#allocation5 + $0x5c0] sm:$0xff]
    %v259 = vld [vmem:[#allocation5 + $0x5c8] sm:$0xff]
    %v260 = vld [vmem:[#allocation5 + $0x5d0] sm:$0xff]
    %v261 = vld [vmem:[#allocation5 + $0x5d8] sm:$0xff]
    %v262 = vld [vmem:[#allocation5 + $0x5e0] sm:$0xff]
    %v263 = vld [vmem:[#allocation5 + $0x5e8] sm:$0xff]
    %v264 = vld [vmem:[#allocation5 + $0x5f0] sm:$0xff]
    %v265 = vld [vmem:[#allocation5 + $0x5f8] sm:$0xff]
    %v266 = vld [vmem:[#allocation5 + $0x600] sm:$0xff]
    %v267 = vld [vmem:[#allocation5 + $0x608] sm:$0xff]
    %v268 = vld [vmem:[#allocation5 + $0x610] sm:$0xff]
    %v269 = vld [vmem:[#allocation5 + $0x618] sm:$0xff]
    %v270 = vld [vmem:[#allocation5 + $0x620] sm:$0xff]
    %v271 = vld [vmem:[#allocation5 + $0x628] sm:$0xff]
    %v272 = vld [vmem:[#allocation5 + $0x630] sm:$0xff]
    %v273 = vld [vmem:[#allocation5 + $0x638] sm:$0xff]
    %v274 = vld [vmem:[#allocation5 + $0x640] sm:$0xff]
    %v275 = vld [vmem:[#allocation5 + $0x648] sm:$0xff]
    %v276 = vld [vmem:[#allocation5 + $0x650] sm:$0xff]
    %v277 = vld [vmem:[#allocation5 + $0x658] sm:$0xff]
    %v278 = vld [vmem:[#allocation5 + $0x660] sm:$0xff]
    %v279 = vld [vmem:[#allocation5 + $0x668] sm:$0xff]
    %v280 = vld [vmem:[#allocation5 + $0x670] sm:$0xff]
    %v281 = vld [vmem:[#allocation5 + $0x678] sm:$0xff]
    %v282 = vld [vmem:[#allocation5 + $0x680] sm:$0xff]
    %v283 = vld [vmem:[#allocation5 + $0x688] sm:$0xff]
    %v284 = vld [vmem:[#allocation5 + $0x690] sm:$0xff]
    %v285 = vld [vmem:[#allocation5 + $0x698] sm:$0xff]
    %v286 = vld [vmem:[#allocation5 + $0x6a0] sm:$0xff]
    %v287 = vld [vmem:[#allocation5 + $0x6a8] sm:$0xff]
    %v288 = vld [vmem:[#allocation5 + $0x6b0] sm:$0xff]
    %v289 = vld [vmem:[#allocation5 + $0x6b8] sm:$0xff]
    %v290 = vld [vmem:[#allocation5 + $0x6c0] sm:$0xff]
    %v291 = vld [vmem:[#allocation5 + $0x6c8] sm:$0xff]
    %v292 = vld [vmem:[#allocation5 + $0x6d0] sm:$0xff]
    %v293 = vld [vmem:[#allocation5 + $0x6d8] sm:$0xff]
    %v294 = vld [vmem:[#allocation5 + $0x6e0] sm:$0xff]
    %v295 = vld [vmem:[#allocation5 + $0x6e8] sm:$0xff]
    %v296 = vld [vmem:[#allocation5 + $0x6f0] sm:$0xff]
    %v297 = vld [vmem:[#allocation5 + $0x6f8] sm:$0xff]
    %v298 = vld [vmem:[#allocation5 + $0x700] sm:$0xff]
    %v299 = vld [vmem:[#allocation5 + $0x708] sm:$0xff]
    %v300 = vld [vmem:[#allocation5 + $0x710] sm:$0xff]
    %v301 = vld [vmem:[#allocation5 + $0x718] sm:$0xff]
    %v302 = vld [vmem:[#allocation5 + $0x720] sm:$0xff]
    %v303 = vld [vmem:[#allocation5 + $0x728] sm:$0xff]
    %v304 = vld [vmem:[#allocation5 + $0x730] sm:$0xff]
    %v305 = vld [vmem:[#allocation5 + $0x738] sm:$0xff]
    %v306 = vld [vmem:[#allocation5 + $0x740] sm:$0xff]
    %v307 = vld [vmem:[#allocation5 + $0x748] sm:$0xff]
    %v308 = vld [vmem:[#allocation5 + $0x750] sm:$0xff]
    %v309 = vld [vmem:[#allocation5 + $0x758] sm:$0xff]
    %v310 = vld [vmem:[#allocation5 + $0x760] sm:$0xff]
    %v311 = vld [vmem:[#allocation5 + $0x768] sm:$0xff]
    %v312 = vld [vmem:[#allocation5 + $0x770] sm:$0xff]
    %v313 = vld [vmem:[#allocation5 + $0x778] sm:$0xff]
    %v314 = vld [vmem:[#allocation5 + $0x780] sm:$0xff]
    %v315 = vld [vmem:[#allocation5 + $0x788] sm:$0xff]
    %v316 = vld [vmem:[#allocation5 + $0x790] sm:$0xff]
    %v317 = vld [vmem:[#allocation5 + $0x798] sm:$0xff]
    %v318 = vld [vmem:[#allocation5 + $0x7a0] sm:$0xff]
    %v319 = vld [vmem:[#allocation5 + $0x7a8] sm:$0xff]
    %v320 = vld [vmem:[#allocation5 + $0x7b0] sm:$0xff]
    %v321 = vld [vmem:[#allocation5 + $0x7b8] sm:$0xff]
    %v322 = vld [vmem:[#allocation5 + $0x7c0] sm:$0xff]
    %v323 = vld [vmem:[#allocation5 + $0x7c8] sm:$0xff]
    %v324 = vld [vmem:[#allocation5 + $0x7d0] sm:$0xff]
    %v325 = vld [vmem:[#allocation5 + $0x7d8] sm:$0xff]
    %v326 = vld [vmem:[#allocation5 + $0x7e0] sm:$0xff]
    %v327 = vld [vmem:[#allocation5 + $0x7e8] sm:$0xff]
    %v328 = vld [vmem:[#allocation5 + $0x7f0] sm:$0xff]
    %v329 = vld [vmem:[#allocation5 + $0x7f8] sm:$0xff]
    %v330 = vld [vmem:[#allocation5 + $0x800] sm:$0xff]
    %v331 = vld [vmem:[#allocation5 + $0x808] sm:$0xff]
    %v332 = vld [vmem:[#allocation5 + $0x810] sm:$0xff]
    %v333 = vld [vmem:[#allocation5 + $0x818] sm:$0xff]
    %v334 = vld [vmem:[#allocation5 + $0x820] sm:$0xff]
    %v335 = vld [vmem:[#allocation5 + $0x828] sm:$0xff]
    %v336 = vld [vmem:[#allocation5 + $0x830] sm:$0xff]
    %v337 = vld [vmem:[#allocation5 + $0x838] sm:$0xff]
    %v338 = vld [vmem:[#allocation5 + $0x840] sm:$0xff]
    %v339 = vld [vmem:[#allocation5 + $0x848] sm:$0xff]
    %v340 = vld [vmem:[#allocation5 + $0x850] sm:$0xff]
    %v341 = vld [vmem:[#allocation5 + $0x858] sm:$0xff]
    %v342 = vld [vmem:[#allocation5 + $0x860] sm:$0xff]
    %v343 = vld [vmem:[#allocation5 + $0x868] sm:$0xff]
    %v344 = vld [vmem:[#allocation5 + $0x870] sm:$0xff]
    %v345 = vld [vmem:[#allocation5 + $0x878] sm:$0xff]
    %v346 = vld [vmem:[#allocation5 + $0x880] sm:$0xff]
    %v347 = vld [vmem:[#allocation5 + $0x888] sm:$0xff]
    %v348 = vld [vmem:[#allocation5 + $0x890] sm:$0xff]
    %v349 = vld [vmem:[#allocation5 + $0x898] sm:$0xff]
    %v350 = vld [vmem:[#allocation5 + $0x8a0] sm:$0xff]
    %v351 = vld [vmem:[#allocation5 + $0x8a8] sm:$0xff]
    %v352 = vld [vmem:[#allocation5 + $0x8b0] sm:$0xff]
    %v353 = vld [vmem:[#allocation5 + $0x8b8] sm:$0xff]
    %v354 = vld [vmem:[#allocation5 + $0x8c0] sm:$0xff]
    %v355 = vld [vmem:[#allocation5 + $0x8c8] sm:$0xff]
    %v356 = vld [vmem:[#allocation5 + $0x8d0] sm:$0xff]
    %v357 = vld [vmem:[#allocation5 + $0x8d8] sm:$0xff]
    %v358 = vld [vmem:[#allocation5 + $0x8e0] sm:$0xff]
    %v359 = vld [vmem:[#allocation5 + $0x8e8] sm:$0xff]
    %v360 = vld [vmem:[#allocation5 + $0x8f0] sm:$0xff]
    %v361 = vld [vmem:[#allocation5 + $0x8f8] sm:$0xff]
    %v362 = vld [vmem:[#allocation5 + $0x900] sm:$0xff]
    %v363 = vld [vmem:[#allocation5 + $0x908] sm:$0xff]
    %v364 = vld [vmem:[#allocation5 + $0x910] sm:$0xff]
    %v365 = vld [vmem:[#allocation5 + $0x918] sm:$0xff]
    %v366 = vld [vmem:[#allocation5 + $0x920] sm:$0xff]
    %v367 = vld [vmem:[#allocation5 + $0x928] sm:$0xff]
    %v368 = vld [vmem:[#allocation5 + $0x930] sm:$0xff]
    %v369 = vld [vmem:[#allocation5 + $0x938] sm:$0xff]
    %v370 = vld [vmem:[#allocation5 + $0x940] sm:$0xff]
    %v371 = vld [vmem:[#allocation5 + $0x948] sm:$0xff]
    %v372 = vld [vmem:[#allocation5 + $0x950] sm:$0xff]
    %v373 = vld [vmem:[#allocation5 + $0x958] sm:$0xff]
    %v374 = vld [vmem:[#allocation5 + $0x960] sm:$0xff]
    %v375 = vld [vmem:[#allocation5 + $0x968] sm:$0xff]
    %v376 = vld [vmem:[#allocation5 + $0x970] sm:$0xff]
    %v377 = vld [vmem:[#allocation5 + $0x978] sm:$0xff]
    %v378 = vld [vmem:[#allocation5 + $0x980] sm:$0xff]
    %v379 = vld [vmem:[#allocation5 + $0x988] sm:$0xff]
    %v380 = vld [vmem:[#allocation5 + $0x990] sm:$0xff]
    %v381 = vld [vmem:[#allocation5 + $0x998] sm:$0xff]
    %v382 = vld [vmem:[#allocation5 + $0x9a0] sm:$0xff]
    %v383 = vld [vmem:[#allocation5 + $0x9a8] sm:$0xff]
    %v384 = vld [vmem:[#allocation5 + $0x9b0] sm:$0xff]
    %v385 = vld [vmem:[#allocation5 + $0x9b8] sm:$0xff]
    %v386 = vld [vmem:[#allocation5 + $0x9c0] sm:$0xff]
    %v387 = vld [vmem:[#allocation5 + $0x9c8] sm:$0xff]
    %v388 = vld [vmem:[#allocation5 + $0x9d0] sm:$0xff]
    %v389 = vld [vmem:[#allocation5 + $0x9d8] sm:$0xff]
    %v390 = vld [vmem:[#allocation5 + $0x9e0] sm:$0xff]
    %v391 = vld [vmem:[#allocation5 + $0x9e8] sm:$0xff]
    %v392 = vld [vmem:[#allocation5 + $0x9f0] sm:$0xff]
    %v393 = vld [vmem:[#allocation5 + $0x9f8] sm:$0xff]
    %v394 = vld [vmem:[#allocation5 + $0xa00] sm:$0xff]
    %v395 = vld [vmem:[#allocation5 + $0xa08] sm:$0xff]
    %v396 = vld [vmem:[#allocation5 + $0xa10] sm:$0xff]
    %v397 = vld [vmem:[#allocation5 + $0xa18] sm:$0xff]
    %v398 = vld [vmem:[#allocation5 + $0xa20] sm:$0xff]
    %v399 = vld [vmem:[#allocation5 + $0xa28] sm:$0xff]
    %v400 = vld [vmem:[#allocation5 + $0xa30] sm:$0xff]
    %v401 = vld [vmem:[#allocation5 + $0xa38] sm:$0xff]
    %v402 = vld [vmem:[#allocation5 + $0xa40] sm:$0xff]
    %v403 = vld [vmem:[#allocation5 + $0xa48] sm:$0xff]
    %v404 = vld [vmem:[#allocation5 + $0xa50] sm:$0xff]
    %v405 = vld [vmem:[#allocation5 + $0xa58] sm:$0xff]
    %v406 = vld [vmem:[#allocation5 + $0xa60] sm:$0xff]
    %v407 = vld [vmem:[#allocation5 + $0xa68] sm:$0xff]
    %v408 = vld [vmem:[#allocation5 + $0xa70] sm:$0xff]
    %v409 = vld [vmem:[#allocation5 + $0xa78] sm:$0xff]
    %v410 = vld [vmem:[#allocation5 + $0xa80] sm:$0xff]
    %v411 = vld [vmem:[#allocation5 + $0xa88] sm:$0xff]
    %v412 = vld [vmem:[#allocation5 + $0xa90] sm:$0xff]
    %v413 = vld [vmem:[#allocation5 + $0xa98] sm:$0xff]
    %v414 = vld [vmem:[#allocation5 + $0xaa0] sm:$0xff]
    %v415 = vld [vmem:[#allocation5 + $0xaa8] sm:$0xff]
    %v416 = vld [vmem:[#allocation5 + $0xab0] sm:$0xff]
    %v417 = vld [vmem:[#allocation5 + $0xab8] sm:$0xff]
    %v418 = vld [vmem:[#allocation5 + $0xac0] sm:$0xff]
    %v419 = vld [vmem:[#allocation5 + $0xac8] sm:$0xff]
    %v420 = vld [vmem:[#allocation5 + $0xad0] sm:$0xff]
    %v421 = vld [vmem:[#allocation5 + $0xad8] sm:$0xff]
    %v422 = vld [vmem:[#allocation5 + $0xae0] sm:$0xff]
    %v423 = vld [vmem:[#allocation5 + $0xae8] sm:$0xff]
    %v424 = vld [vmem:[#allocation5 + $0xaf0] sm:$0xff]
    %v425 = vld [vmem:[#allocation5 + $0xaf8] sm:$0xff]
    %v426 = vld [vmem:[#allocation5 + $0xb00] sm:$0xff]
    %v427 = vld [vmem:[#allocation5 + $0xb08] sm:$0xff]
    %v428 = vld [vmem:[#allocation5 + $0xb10] sm:$0xff]
    %v429 = vld [vmem:[#allocation5 + $0xb18] sm:$0xff]
    %v430 = vld [vmem:[#allocation5 + $0xb20] sm:$0xff]
    %v431 = vld [vmem:[#allocation5 + $0xb28] sm:$0xff]
    %v432 = vld [vmem:[#allocation5 + $0xb30] sm:$0xff]
    %v433 = vld [vmem:[#allocation5 + $0xb38] sm:$0xff]
    %v434 = vld [vmem:[#allocation5 + $0xb40] sm:$0xff]
    %v435 = vld [vmem:[#allocation5 + $0xb48] sm:$0xff]
    %v436 = vld [vmem:[#allocation5 + $0xb50] sm:$0xff]
    %v437 = vld [vmem:[#allocation5 + $0xb58] sm:$0xff]
    %v438 = vld [vmem:[#allocation5 + $0xb60] sm:$0xff]
    %v439 = vld [vmem:[#allocation5 + $0xb68] sm:$0xff]
    %v440 = vld [vmem:[#allocation5 + $0xb70] sm:$0xff]
    %v441 = vld [vmem:[#allocation5 + $0xb78] sm:$0xff]
    %v442 = vld [vmem:[#allocation5 + $0xb80] sm:$0xff]
    %v443 = vld [vmem:[#allocation5 + $0xb88] sm:$0xff]
    %v444 = vld [vmem:[#allocation5 + $0xb90] sm:$0xff]
    %v445 = vld [vmem:[#allocation5 + $0xb98] sm:$0xff]
    %v446 = vld [vmem:[#allocation5 + $0xba0] sm:$0xff]
    %v447 = vld [vmem:[#allocation5 + $0xba8] sm:$0xff]
    %v448 = vld [vmem:[#allocation5 + $0xbb0] sm:$0xff]
    %v449 = vld [vmem:[#allocation5 + $0xbb8] sm:$0xff]
    %v450 = vld [vmem:[#allocation5 + $0xbc0] sm:$0xff]
    %v451 = vld [vmem:[#allocation5 + $0xbc8] sm:$0xff]
    %v452 = vld [vmem:[#allocation5 + $0xbd0] sm:$0xff]
    %v453 = vld [vmem:[#allocation5 + $0xbd8] sm:$0xff]
    %v454 = vld [vmem:[#allocation5 + $0xbe0] sm:$0xff]
    %v455 = vld [vmem:[#allocation5 + $0xbe8] sm:$0xff]
    %v456 = vld [vmem:[#allocation5 + $0xbf0] sm:$0xff]
    %v457 = vld [vmem:[#allocation5 + $0xbf8] sm:$0xff]
    %v458 = vld [vmem:[#allocation7] sm:$0xff]
    %v460 = vlaneseq
    %v461 = vshrl.u32 %v460, 7
    %v462 = vsub.s32 0, %v461
    %v463 = vrot.slane %v458, %v462
    %v464 = vlaneseq
    %v465 = vshrl.u32 %v464, 7
    %v466 = vsub.s32 1, %v465
    %v467 = vrot.slane %v458, %v466
    %v468 = vlaneseq
    %v469 = vshrl.u32 %v468, 7
    %v470 = vsub.s32 2, %v469
    %v471 = vrot.slane %v458, %v470
    %v472 = vlaneseq
    %v473 = vshrl.u32 %v472, 7
    %v474 = vsub.s32 3, %v473
    %v475 = vrot.slane %v458, %v474
    %v476 = vlaneseq
    %v477 = vshrl.u32 %v476, 7
    %v478 = vsub.s32 4, %v477
    %v479 = vrot.slane %v458, %v478
    %v480 = vlaneseq
    %v481 = vshrl.u32 %v480, 7
    %v482 = vsub.s32 5, %v481
    %v483 = vrot.slane %v458, %v482
    %v484 = vlaneseq
    %v485 = vshrl.u32 %v484, 7
    %v486 = vsub.s32 6, %v485
    %v487 = vrot.slane %v458, %v486
    %v488 = vlaneseq
    %v489 = vshrl.u32 %v488, 7
    %v490 = vsub.s32 7, %v489
    %v491 = vrot.slane %v458, %v490
    %v503 = vunpack.c.l.b16 %v71
    %v504 = vunpack.c.h.b16 %v71
    %v505 = vunpack.c.l.b16 %v72
    %v506 = vunpack.c.h.b16 %v72
    %v507 = vunpack.c.l.b16 %v73
    %v508 = vunpack.c.h.b16 %v73
    %v509 = vpack.c.b16 %v503, %v503
    %v510 = vpack.c.b16 %v504, %v504
    %v511 = vpack.c.b16 %v505, %v505
    %v512 = vpack.c.b16 %v506, %v506
    %v513 = vpack.c.b16 %v507, %v507
    %v514 = vpack.c.b16 %v508, %v508
    %v905 = vunpack.c.l.b16 %v74
    %v906 = vunpack.c.h.b16 %v74
    %v907 = vunpack.c.l.b16 %v75
    %v908 = vunpack.c.h.b16 %v75
    %v909 = vunpack.c.l.b16 %v76
    %v910 = vunpack.c.h.b16 %v76
    %v911 = vunpack.c.l.b16 %v77
    %v912 = vunpack.c.h.b16 %v77
    %v913 = vunpack.c.l.b16 %v78
    %v914 = vunpack.c.h.b16 %v78
    %v915 = vunpack.c.l.b16 %v79
    %v916 = vunpack.c.h.b16 %v79
    %v917 = vunpack.c.l.b16 %v80
    %v918 = vunpack.c.h.b16 %v80
    %v919 = vunpack.c.l.b16 %v81
    %v920 = vunpack.c.h.b16 %v81
    %v921 = vunpack.c.l.b16 %v82
    %v922 = vunpack.c.h.b16 %v82
    %v923 = vunpack.c.l.b16 %v83
    %v924 = vunpack.c.h.b16 %v83
    %v925 = vunpack.c.l.b16 %v84
    %v926 = vunpack.c.h.b16 %v84
    %v927 = vunpack.c.l.b16 %v85
    %v928 = vunpack.c.h.b16 %v85
    %v929 = vunpack.c.l.b16 %v86
    %v930 = vunpack.c.h.b16 %v86
    %v931 = vunpack.c.l.b16 %v87
    %v932 = vunpack.c.h.b16 %v87
    %v933 = vunpack.c.l.b16 %v88
    %v934 = vunpack.c.h.b16 %v88
    %v935 = vunpack.c.l.b16 %v89
    %v936 = vunpack.c.h.b16 %v89
    %v937 = vunpack.c.l.b16 %v90
    %v938 = vunpack.c.h.b16 %v90
    %v939 = vunpack.c.l.b16 %v91
    %v940 = vunpack.c.h.b16 %v91
    %v941 = vunpack.c.l.b16 %v92
    %v942 = vunpack.c.h.b16 %v92
    %v943 = vunpack.c.l.b16 %v93
    %v944 = vunpack.c.h.b16 %v93
    %v945 = vunpack.c.l.b16 %v94
    %v946 = vunpack.c.h.b16 %v94
    %v947 = vunpack.c.l.b16 %v95
    %v948 = vunpack.c.h.b16 %v95
    %v949 = vunpack.c.l.b16 %v96
    %v950 = vunpack.c.h.b16 %v96
    %v951 = vunpack.c.l.b16 %v97
    %v952 = vunpack.c.h.b16 %v97
    %v953 = vunpack.c.l.b16 %v98
    %v954 = vunpack.c.h.b16 %v98
    %v955 = vunpack.c.l.b16 %v99
    %v956 = vunpack.c.h.b16 %v99
    %v957 = vunpack.c.l.b16 %v100
    %v958 = vunpack.c.h.b16 %v100
    %v959 = vunpack.c.l.b16 %v101
    %v960 = vunpack.c.h.b16 %v101
    %v961 = vunpack.c.l.b16 %v102
    %v962 = vunpack.c.h.b16 %v102
    %v963 = vunpack.c.l.b16 %v103
    %v964 = vunpack.c.h.b16 %v103
    %v965 = vunpack.c.l.b16 %v104
    %v966 = vunpack.c.h.b16 %v104
    %v967 = vunpack.c.l.b16 %v105
    %v968 = vunpack.c.h.b16 %v105
    %v969 = vunpack.c.l.b16 %v106
    %v970 = vunpack.c.h.b16 %v106
    %v971 = vunpack.c.l.b16 %v107
    %v972 = vunpack.c.h.b16 %v107
    %v973 = vunpack.c.l.b16 %v108
    %v974 = vunpack.c.h.b16 %v108
    %v975 = vunpack.c.l.b16 %v109
    %v976 = vunpack.c.h.b16 %v109
    %v977 = vunpack.c.l.b16 %v110
    %v978 = vunpack.c.h.b16 %v110
    %v979 = vunpack.c.l.b16 %v111
    %v980 = vunpack.c.h.b16 %v111
    %v981 = vunpack.c.l.b16 %v112
    %v982 = vunpack.c.h.b16 %v112
    %v983 = vunpack.c.l.b16 %v113
    %v984 = vunpack.c.h.b16 %v113
    %v985 = vunpack.c.l.b16 %v114
    %v986 = vunpack.c.h.b16 %v114
    %v987 = vunpack.c.l.b16 %v115
    %v988 = vunpack.c.h.b16 %v115
    %v989 = vunpack.c.l.b16 %v116
    %v990 = vunpack.c.h.b16 %v116
    %v991 = vunpack.c.l.b16 %v117
    %v992 = vunpack.c.h.b16 %v117
    %v993 = vunpack.c.l.b16 %v118
    %v994 = vunpack.c.h.b16 %v118
    %v995 = vunpack.c.l.b16 %v119
    %v996 = vunpack.c.h.b16 %v119
    %v997 = vunpack.c.l.b16 %v120
    %v998 = vunpack.c.h.b16 %v120
    %v999 = vunpack.c.l.b16 %v121
    %v1000 = vunpack.c.h.b16 %v121
    %v1001 = vunpack.c.l.b16 %v122
    %v1002 = vunpack.c.h.b16 %v122
    %v1003 = vunpack.c.l.b16 %v123
    %v1004 = vunpack.c.h.b16 %v123
    %v1005 = vunpack.c.l.b16 %v124
    %v1006 = vunpack.c.h.b16 %v124
    %v1007 = vunpack.c.l.b16 %v125
    %v1008 = vunpack.c.h.b16 %v125
    %v1009 = vunpack.c.l.b16 %v126
    %v1010 = vunpack.c.h.b16 %v126
    %v1011 = vunpack.c.l.b16 %v127
    %v1012 = vunpack.c.h.b16 %v127
    %v1013 = vunpack.c.l.b16 %v128
    %v1014 = vunpack.c.h.b16 %v128
    %v1015 = vunpack.c.l.b16 %v129
    %v1016 = vunpack.c.h.b16 %v129
    %v1017 = vunpack.c.l.b16 %v130
    %v1018 = vunpack.c.h.b16 %v130
    %v1019 = vunpack.c.l.b16 %v131
    %v1020 = vunpack.c.h.b16 %v131
    %v1021 = vunpack.c.l.b16 %v132
    %v1022 = vunpack.c.h.b16 %v132
    %v1023 = vunpack.c.l.b16 %v133
    %v1024 = vunpack.c.h.b16 %v133
    %v1025 = vunpack.c.l.b16 %v134
    %v1026 = vunpack.c.h.b16 %v134
    %v1027 = vunpack.c.l.b16 %v135
    %v1028 = vunpack.c.h.b16 %v135
    %v1029 = vunpack.c.l.b16 %v136
    %v1030 = vunpack.c.h.b16 %v136
    %v1031 = vunpack.c.l.b16 %v137
    %v1032 = vunpack.c.h.b16 %v137
    %v1033 = vunpack.c.l.b16 %v138
    %v1034 = vunpack.c.h.b16 %v138
    %v1035 = vunpack.c.l.b16 %v139
    %v1036 = vunpack.c.h.b16 %v139
    %v1037 = vunpack.c.l.b16 %v140
    %v1038 = vunpack.c.h.b16 %v140
    %v1039 = vunpack.c.l.b16 %v141
    %v1040 = vunpack.c.h.b16 %v141
    %v1041 = vunpack.c.l.b16 %v142
    %v1042 = vunpack.c.h.b16 %v142
    %v1043 = vunpack.c.l.b16 %v143
    %v1044 = vunpack.c.h.b16 %v143
    %v1045 = vunpack.c.l.b16 %v144
    %v1046 = vunpack.c.h.b16 %v144
    %v1047 = vunpack.c.l.b16 %v145
    %v1048 = vunpack.c.h.b16 %v145
    %v1049 = vunpack.c.l.b16 %v146
    %v1050 = vunpack.c.h.b16 %v146
    %v1051 = vunpack.c.l.b16 %v147
    %v1052 = vunpack.c.h.b16 %v147
    %v1053 = vunpack.c.l.b16 %v148
    %v1054 = vunpack.c.h.b16 %v148
    %v1055 = vunpack.c.l.b16 %v149
    %v1056 = vunpack.c.h.b16 %v149
    %v1057 = vunpack.c.l.b16 %v150
    %v1058 = vunpack.c.h.b16 %v150
    %v1059 = vunpack.c.l.b16 %v151
    %v1060 = vunpack.c.h.b16 %v151
    %v1061 = vunpack.c.l.b16 %v152
    %v1062 = vunpack.c.h.b16 %v152
    %v1063 = vunpack.c.l.b16 %v153
    %v1064 = vunpack.c.h.b16 %v153
    %v1065 = vunpack.c.l.b16 %v154
    %v1066 = vunpack.c.h.b16 %v154
    %v1067 = vunpack.c.l.b16 %v155
    %v1068 = vunpack.c.h.b16 %v155
    %v1069 = vunpack.c.l.b16 %v156
    %v1070 = vunpack.c.h.b16 %v156
    %v1071 = vunpack.c.l.b16 %v157
    %v1072 = vunpack.c.h.b16 %v157
    %v1073 = vunpack.c.l.b16 %v158
    %v1074 = vunpack.c.h.b16 %v158
    %v1075 = vunpack.c.l.b16 %v159
    %v1076 = vunpack.c.h.b16 %v159
    %v1077 = vunpack.c.l.b16 %v160
    %v1078 = vunpack.c.h.b16 %v160
    %v1079 = vunpack.c.l.b16 %v161
    %v1080 = vunpack.c.h.b16 %v161
    %v1081 = vunpack.c.l.b16 %v162
    %v1082 = vunpack.c.h.b16 %v162
    %v1083 = vunpack.c.l.b16 %v163
    %v1084 = vunpack.c.h.b16 %v163
    %v1085 = vunpack.c.l.b16 %v164
    %v1086 = vunpack.c.h.b16 %v164
    %v1087 = vunpack.c.l.b16 %v165
    %v1088 = vunpack.c.h.b16 %v165
    %v1089 = vunpack.c.l.b16 %v166
    %v1090 = vunpack.c.h.b16 %v166
    %v1091 = vunpack.c.l.b16 %v167
    %v1092 = vunpack.c.h.b16 %v167
    %v1093 = vunpack.c.l.b16 %v168
    %v1094 = vunpack.c.h.b16 %v168
    %v1095 = vunpack.c.l.b16 %v169
    %v1096 = vunpack.c.h.b16 %v169
    %v1097 = vunpack.c.l.b16 %v170
    %v1098 = vunpack.c.h.b16 %v170
    %v1099 = vunpack.c.l.b16 %v171
    %v1100 = vunpack.c.h.b16 %v171
    %v1101 = vunpack.c.l.b16 %v172
    %v1102 = vunpack.c.h.b16 %v172
    %v1103 = vunpack.c.l.b16 %v173
    %v1104 = vunpack.c.h.b16 %v173
    %v1105 = vunpack.c.l.b16 %v174
    %v1106 = vunpack.c.h.b16 %v174
    %v1107 = vunpack.c.l.b16 %v175
    %v1108 = vunpack.c.h.b16 %v175
    %v1109 = vunpack.c.l.b16 %v176
    %v1110 = vunpack.c.h.b16 %v176
    %v1111 = vunpack.c.l.b16 %v177
    %v1112 = vunpack.c.h.b16 %v177
    %v1113 = vunpack.c.l.b16 %v178
    %v1114 = vunpack.c.h.b16 %v178
    %v1115 = vunpack.c.l.b16 %v179
    %v1116 = vunpack.c.h.b16 %v179
    %v1117 = vunpack.c.l.b16 %v180
    %v1118 = vunpack.c.h.b16 %v180
    %v1119 = vunpack.c.l.b16 %v181
    %v1120 = vunpack.c.h.b16 %v181
    %v1121 = vunpack.c.l.b16 %v182
    %v1122 = vunpack.c.h.b16 %v182
    %v1123 = vunpack.c.l.b16 %v183
    %v1124 = vunpack.c.h.b16 %v183
    %v1125 = vunpack.c.l.b16 %v184
    %v1126 = vunpack.c.h.b16 %v184
    %v1127 = vunpack.c.l.b16 %v185
    %v1128 = vunpack.c.h.b16 %v185
    %v1129 = vunpack.c.l.b16 %v186
    %v1130 = vunpack.c.h.b16 %v186
    %v1131 = vunpack.c.l.b16 %v187
    %v1132 = vunpack.c.h.b16 %v187
    %v1133 = vunpack.c.l.b16 %v188
    %v1134 = vunpack.c.h.b16 %v188
    %v1135 = vunpack.c.l.b16 %v189
    %v1136 = vunpack.c.h.b16 %v189
    %v1137 = vunpack.c.l.b16 %v190
    %v1138 = vunpack.c.h.b16 %v190
    %v1139 = vunpack.c.l.b16 %v191
    %v1140 = vunpack.c.h.b16 %v191
    %v1141 = vunpack.c.l.b16 %v192
    %v1142 = vunpack.c.h.b16 %v192
    %v1143 = vunpack.c.l.b16 %v193
    %v1144 = vunpack.c.h.b16 %v193
    %v1145 = vunpack.c.l.b16 %v194
    %v1146 = vunpack.c.h.b16 %v194
    %v1147 = vunpack.c.l.b16 %v195
    %v1148 = vunpack.c.h.b16 %v195
    %v1149 = vunpack.c.l.b16 %v196
    %v1150 = vunpack.c.h.b16 %v196
    %v1151 = vunpack.c.l.b16 %v197
    %v1152 = vunpack.c.h.b16 %v197
    %v1153 = vunpack.c.l.b16 %v198
    %v1154 = vunpack.c.h.b16 %v198
    %v1155 = vunpack.c.l.b16 %v199
    %v1156 = vunpack.c.h.b16 %v199
    %v1157 = vunpack.c.l.b16 %v200
    %v1158 = vunpack.c.h.b16 %v200
    %v1159 = vunpack.c.l.b16 %v201
    %v1160 = vunpack.c.h.b16 %v201
    %v1161 = vunpack.c.l.b16 %v202
    %v1162 = vunpack.c.h.b16 %v202
    %v1163 = vunpack.c.l.b16 %v203
    %v1164 = vunpack.c.h.b16 %v203
    %v1165 = vunpack.c.l.b16 %v204
    %v1166 = vunpack.c.h.b16 %v204
    %v1167 = vunpack.c.l.b16 %v205
    %v1168 = vunpack.c.h.b16 %v205
    %v1169 = vunpack.c.l.b16 %v206
    %v1170 = vunpack.c.h.b16 %v206
    %v1171 = vunpack.c.l.b16 %v207
    %v1172 = vunpack.c.h.b16 %v207
    %v1173 = vunpack.c.l.b16 %v208
    %v1174 = vunpack.c.h.b16 %v208
    %v1175 = vunpack.c.l.b16 %v209
    %v1176 = vunpack.c.h.b16 %v209
    %v1177 = vunpack.c.l.b16 %v210
    %v1178 = vunpack.c.h.b16 %v210
    %v1179 = vunpack.c.l.b16 %v211
    %v1180 = vunpack.c.h.b16 %v211
    %v1181 = vunpack.c.l.b16 %v212
    %v1182 = vunpack.c.h.b16 %v212
    %v1183 = vunpack.c.l.b16 %v213
    %v1184 = vunpack.c.h.b16 %v213
    %v1185 = vunpack.c.l.b16 %v214
    %v1186 = vunpack.c.h.b16 %v214
    %v1187 = vunpack.c.l.b16 %v215
    %v1188 = vunpack.c.h.b16 %v215
    %v1189 = vunpack.c.l.b16 %v216
    %v1190 = vunpack.c.h.b16 %v216
    %v1191 = vunpack.c.l.b16 %v217
    %v1192 = vunpack.c.h.b16 %v217
    %v1193 = vunpack.c.l.b16 %v218
    %v1194 = vunpack.c.h.b16 %v218
    %v1195 = vunpack.c.l.b16 %v219
    %v1196 = vunpack.c.h.b16 %v219
    %v1197 = vunpack.c.l.b16 %v220
    %v1198 = vunpack.c.h.b16 %v220
    %v1199 = vunpack.c.l.b16 %v221
    %v1200 = vunpack.c.h.b16 %v221
    %v1201 = vunpack.c.l.b16 %v222
    %v1202 = vunpack.c.h.b16 %v222
    %v1203 = vunpack.c.l.b16 %v223
    %v1204 = vunpack.c.h.b16 %v223
    %v1205 = vunpack.c.l.b16 %v224
    %v1206 = vunpack.c.h.b16 %v224
    %v1207 = vunpack.c.l.b16 %v225
    %v1208 = vunpack.c.h.b16 %v225
    %v1209 = vunpack.c.l.b16 %v226
    %v1210 = vunpack.c.h.b16 %v226
    %v1211 = vunpack.c.l.b16 %v227
    %v1212 = vunpack.c.h.b16 %v227
    %v1213 = vunpack.c.l.b16 %v228
    %v1214 = vunpack.c.h.b16 %v228
    %v1215 = vunpack.c.l.b16 %v229
    %v1216 = vunpack.c.h.b16 %v229
    %v1217 = vunpack.c.l.b16 %v230
    %v1218 = vunpack.c.h.b16 %v230
    %v1219 = vunpack.c.l.b16 %v231
    %v1220 = vunpack.c.h.b16 %v231
    %v1221 = vunpack.c.l.b16 %v232
    %v1222 = vunpack.c.h.b16 %v232
    %v1223 = vunpack.c.l.b16 %v233
    %v1224 = vunpack.c.h.b16 %v233
    %v1225 = vunpack.c.l.b16 %v234
    %v1226 = vunpack.c.h.b16 %v234
    %v1227 = vunpack.c.l.b16 %v235
    %v1228 = vunpack.c.h.b16 %v235
    %v1229 = vunpack.c.l.b16 %v236
    %v1230 = vunpack.c.h.b16 %v236
    %v1231 = vunpack.c.l.b16 %v237
    %v1232 = vunpack.c.h.b16 %v237
    %v1233 = vunpack.c.l.b16 %v238
    %v1234 = vunpack.c.h.b16 %v238
    %v1235 = vunpack.c.l.b16 %v239
    %v1236 = vunpack.c.h.b16 %v239
    %v1237 = vunpack.c.l.b16 %v240
    %v1238 = vunpack.c.h.b16 %v240
    %v1239 = vunpack.c.l.b16 %v241
    %v1240 = vunpack.c.h.b16 %v241
    %v1241 = vunpack.c.l.b16 %v242
    %v1242 = vunpack.c.h.b16 %v242
    %v1243 = vunpack.c.l.b16 %v243
    %v1244 = vunpack.c.h.b16 %v243
    %v1245 = vunpack.c.l.b16 %v244
    %v1246 = vunpack.c.h.b16 %v244
    %v1247 = vunpack.c.l.b16 %v245
    %v1248 = vunpack.c.h.b16 %v245
    %v1249 = vunpack.c.l.b16 %v246
    %v1250 = vunpack.c.h.b16 %v246
    %v1251 = vunpack.c.l.b16 %v247
    %v1252 = vunpack.c.h.b16 %v247
    %v1253 = vunpack.c.l.b16 %v248
    %v1254 = vunpack.c.h.b16 %v248
    %v1255 = vunpack.c.l.b16 %v249
    %v1256 = vunpack.c.h.b16 %v249
    %v1257 = vunpack.c.l.b16 %v250
    %v1258 = vunpack.c.h.b16 %v250
    %v1259 = vunpack.c.l.b16 %v251
    %v1260 = vunpack.c.h.b16 %v251
    %v1261 = vunpack.c.l.b16 %v252
    %v1262 = vunpack.c.h.b16 %v252
    %v1263 = vunpack.c.l.b16 %v253
    %v1264 = vunpack.c.h.b16 %v253
    %v1265 = vunpack.c.l.b16 %v254
    %v1266 = vunpack.c.h.b16 %v254
    %v1267 = vunpack.c.l.b16 %v255
    %v1268 = vunpack.c.h.b16 %v255
    %v1269 = vunpack.c.l.b16 %v256
    %v1270 = vunpack.c.h.b16 %v256
    %v1271 = vunpack.c.l.b16 %v257
    %v1272 = vunpack.c.h.b16 %v257
    %v1273 = vunpack.c.l.b16 %v258
    %v1274 = vunpack.c.h.b16 %v258
    %v1275 = vunpack.c.l.b16 %v259
    %v1276 = vunpack.c.h.b16 %v259
    %v1277 = vunpack.c.l.b16 %v260
    %v1278 = vunpack.c.h.b16 %v260
    %v1279 = vunpack.c.l.b16 %v261
    %v1280 = vunpack.c.h.b16 %v261
    %v1281 = vunpack.c.l.b16 %v262
    %v1282 = vunpack.c.h.b16 %v262
    %v1283 = vunpack.c.l.b16 %v263
    %v1284 = vunpack.c.h.b16 %v263
    %v1285 = vunpack.c.l.b16 %v264
    %v1286 = vunpack.c.h.b16 %v264
    %v1287 = vunpack.c.l.b16 %v265
    %v1288 = vunpack.c.h.b16 %v265
    %v1289 = vunpack.c.l.b16 %v266
    %v1290 = vunpack.c.h.b16 %v266
    %v1291 = vunpack.c.l.b16 %v267
    %v1292 = vunpack.c.h.b16 %v267
    %v1293 = vunpack.c.l.b16 %v268
    %v1294 = vunpack.c.h.b16 %v268
    %v1295 = vunpack.c.l.b16 %v269
    %v1296 = vunpack.c.h.b16 %v269
    %v1297 = vunpack.c.l.b16 %v270
    %v1298 = vunpack.c.h.b16 %v270
    %v1299 = vunpack.c.l.b16 %v271
    %v1300 = vunpack.c.h.b16 %v271
    %v1301 = vunpack.c.l.b16 %v272
    %v1302 = vunpack.c.h.b16 %v272
    %v1303 = vunpack.c.l.b16 %v273
    %v1304 = vunpack.c.h.b16 %v273
    %v1305 = vunpack.c.l.b16 %v274
    %v1306 = vunpack.c.h.b16 %v274
    %v1307 = vunpack.c.l.b16 %v275
    %v1308 = vunpack.c.h.b16 %v275
    %v1309 = vunpack.c.l.b16 %v276
    %v1310 = vunpack.c.h.b16 %v276
    %v1311 = vunpack.c.l.b16 %v277
    %v1312 = vunpack.c.h.b16 %v277
    %v1313 = vunpack.c.l.b16 %v278
    %v1314 = vunpack.c.h.b16 %v278
    %v1315 = vunpack.c.l.b16 %v279
    %v1316 = vunpack.c.h.b16 %v279
    %v1317 = vunpack.c.l.b16 %v280
    %v1318 = vunpack.c.h.b16 %v280
    %v1319 = vunpack.c.l.b16 %v281
    %v1320 = vunpack.c.h.b16 %v281
    %v1321 = vunpack.c.l.b16 %v282
    %v1322 = vunpack.c.h.b16 %v282
    %v1323 = vunpack.c.l.b16 %v283
    %v1324 = vunpack.c.h.b16 %v283
    %v1325 = vunpack.c.l.b16 %v284
    %v1326 = vunpack.c.h.b16 %v284
    %v1327 = vunpack.c.l.b16 %v285
    %v1328 = vunpack.c.h.b16 %v285
    %v1329 = vunpack.c.l.b16 %v286
    %v1330 = vunpack.c.h.b16 %v286
    %v1331 = vunpack.c.l.b16 %v287
    %v1332 = vunpack.c.h.b16 %v287
    %v1333 = vunpack.c.l.b16 %v288
    %v1334 = vunpack.c.h.b16 %v288
    %v1335 = vunpack.c.l.b16 %v289
    %v1336 = vunpack.c.h.b16 %v289
    %v1337 = vunpack.c.l.b16 %v290
    %v1338 = vunpack.c.h.b16 %v290
    %v1339 = vunpack.c.l.b16 %v291
    %v1340 = vunpack.c.h.b16 %v291
    %v1341 = vunpack.c.l.b16 %v292
    %v1342 = vunpack.c.h.b16 %v292
    %v1343 = vunpack.c.l.b16 %v293
    %v1344 = vunpack.c.h.b16 %v293
    %v1345 = vunpack.c.l.b16 %v294
    %v1346 = vunpack.c.h.b16 %v294
    %v1347 = vunpack.c.l.b16 %v295
    %v1348 = vunpack.c.h.b16 %v295
    %v1349 = vunpack.c.l.b16 %v296
    %v1350 = vunpack.c.h.b16 %v296
    %v1351 = vunpack.c.l.b16 %v297
    %v1352 = vunpack.c.h.b16 %v297
    %v1353 = vunpack.c.l.b16 %v298
    %v1354 = vunpack.c.h.b16 %v298
    %v1355 = vunpack.c.l.b16 %v299
    %v1356 = vunpack.c.h.b16 %v299
    %v1357 = vunpack.c.l.b16 %v300
    %v1358 = vunpack.c.h.b16 %v300
    %v1359 = vunpack.c.l.b16 %v301
    %v1360 = vunpack.c.h.b16 %v301
    %v1361 = vunpack.c.l.b16 %v302
    %v1362 = vunpack.c.h.b16 %v302
    %v1363 = vunpack.c.l.b16 %v303
    %v1364 = vunpack.c.h.b16 %v303
    %v1365 = vunpack.c.l.b16 %v304
    %v1366 = vunpack.c.h.b16 %v304
    %v1367 = vunpack.c.l.b16 %v305
    %v1368 = vunpack.c.h.b16 %v305
    %v1369 = vunpack.c.l.b16 %v306
    %v1370 = vunpack.c.h.b16 %v306
    %v1371 = vunpack.c.l.b16 %v307
    %v1372 = vunpack.c.h.b16 %v307
    %v1373 = vunpack.c.l.b16 %v308
    %v1374 = vunpack.c.h.b16 %v308
    %v1375 = vunpack.c.l.b16 %v309
    %v1376 = vunpack.c.h.b16 %v309
    %v1377 = vunpack.c.l.b16 %v310
    %v1378 = vunpack.c.h.b16 %v310
    %v1379 = vunpack.c.l.b16 %v311
    %v1380 = vunpack.c.h.b16 %v311
    %v1381 = vunpack.c.l.b16 %v312
    %v1382 = vunpack.c.h.b16 %v312
    %v1383 = vunpack.c.l.b16 %v313
    %v1384 = vunpack.c.h.b16 %v313
    %v1385 = vunpack.c.l.b16 %v314
    %v1386 = vunpack.c.h.b16 %v314
    %v1387 = vunpack.c.l.b16 %v315
    %v1388 = vunpack.c.h.b16 %v315
    %v1389 = vunpack.c.l.b16 %v316
    %v1390 = vunpack.c.h.b16 %v316
    %v1391 = vunpack.c.l.b16 %v317
    %v1392 = vunpack.c.h.b16 %v317
    %v1393 = vunpack.c.l.b16 %v318
    %v1394 = vunpack.c.h.b16 %v318
    %v1395 = vunpack.c.l.b16 %v319
    %v1396 = vunpack.c.h.b16 %v319
    %v1397 = vunpack.c.l.b16 %v320
    %v1398 = vunpack.c.h.b16 %v320
    %v1399 = vunpack.c.l.b16 %v321
    %v1400 = vunpack.c.h.b16 %v321
    %v1401 = vunpack.c.l.b16 %v322
    %v1402 = vunpack.c.h.b16 %v322
    %v1403 = vunpack.c.l.b16 %v323
    %v1404 = vunpack.c.h.b16 %v323
    %v1405 = vunpack.c.l.b16 %v324
    %v1406 = vunpack.c.h.b16 %v324
    %v1407 = vunpack.c.l.b16 %v325
    %v1408 = vunpack.c.h.b16 %v325
    %v1409 = vunpack.c.l.b16 %v326
    %v1410 = vunpack.c.h.b16 %v326
    %v1411 = vunpack.c.l.b16 %v327
    %v1412 = vunpack.c.h.b16 %v327
    %v1413 = vunpack.c.l.b16 %v328
    %v1414 = vunpack.c.h.b16 %v328
    %v1415 = vunpack.c.l.b16 %v329
    %v1416 = vunpack.c.h.b16 %v329
    %v1417 = vunpack.c.l.b16 %v330
    %v1418 = vunpack.c.h.b16 %v330
    %v1419 = vunpack.c.l.b16 %v331
    %v1420 = vunpack.c.h.b16 %v331
    %v1421 = vunpack.c.l.b16 %v332
    %v1422 = vunpack.c.h.b16 %v332
    %v1423 = vunpack.c.l.b16 %v333
    %v1424 = vunpack.c.h.b16 %v333
    %v1425 = vunpack.c.l.b16 %v334
    %v1426 = vunpack.c.h.b16 %v334
    %v1427 = vunpack.c.l.b16 %v335
    %v1428 = vunpack.c.h.b16 %v335
    %v1429 = vunpack.c.l.b16 %v336
    %v1430 = vunpack.c.h.b16 %v336
    %v1431 = vunpack.c.l.b16 %v337
    %v1432 = vunpack.c.h.b16 %v337
    %v1433 = vunpack.c.l.b16 %v338
    %v1434 = vunpack.c.h.b16 %v338
    %v1435 = vunpack.c.l.b16 %v339
    %v1436 = vunpack.c.h.b16 %v339
    %v1437 = vunpack.c.l.b16 %v340
    %v1438 = vunpack.c.h.b16 %v340
    %v1439 = vunpack.c.l.b16 %v341
    %v1440 = vunpack.c.h.b16 %v341
    %v1441 = vunpack.c.l.b16 %v342
    %v1442 = vunpack.c.h.b16 %v342
    %v1443 = vunpack.c.l.b16 %v343
    %v1444 = vunpack.c.h.b16 %v343
    %v1445 = vunpack.c.l.b16 %v344
    %v1446 = vunpack.c.h.b16 %v344
    %v1447 = vunpack.c.l.b16 %v345
    %v1448 = vunpack.c.h.b16 %v345
    %v1449 = vunpack.c.l.b16 %v346
    %v1450 = vunpack.c.h.b16 %v346
    %v1451 = vunpack.c.l.b16 %v347
    %v1452 = vunpack.c.h.b16 %v347
    %v1453 = vunpack.c.l.b16 %v348
    %v1454 = vunpack.c.h.b16 %v348
    %v1455 = vunpack.c.l.b16 %v349
    %v1456 = vunpack.c.h.b16 %v349
    %v1457 = vunpack.c.l.b16 %v350
    %v1458 = vunpack.c.h.b16 %v350
    %v1459 = vunpack.c.l.b16 %v351
    %v1460 = vunpack.c.h.b16 %v351
    %v1461 = vunpack.c.l.b16 %v352
    %v1462 = vunpack.c.h.b16 %v352
    %v1463 = vunpack.c.l.b16 %v353
    %v1464 = vunpack.c.h.b16 %v353
    %v1465 = vunpack.c.l.b16 %v354
    %v1466 = vunpack.c.h.b16 %v354
    %v1467 = vunpack.c.l.b16 %v355
    %v1468 = vunpack.c.h.b16 %v355
    %v1469 = vunpack.c.l.b16 %v356
    %v1470 = vunpack.c.h.b16 %v356
    %v1471 = vunpack.c.l.b16 %v357
    %v1472 = vunpack.c.h.b16 %v357
    %v1473 = vunpack.c.l.b16 %v358
    %v1474 = vunpack.c.h.b16 %v358
    %v1475 = vunpack.c.l.b16 %v359
    %v1476 = vunpack.c.h.b16 %v359
    %v1477 = vunpack.c.l.b16 %v360
    %v1478 = vunpack.c.h.b16 %v360
    %v1479 = vunpack.c.l.b16 %v361
    %v1480 = vunpack.c.h.b16 %v361
    %v1481 = vunpack.c.l.b16 %v362
    %v1482 = vunpack.c.h.b16 %v362
    %v1483 = vunpack.c.l.b16 %v363
    %v1484 = vunpack.c.h.b16 %v363
    %v1485 = vunpack.c.l.b16 %v364
    %v1486 = vunpack.c.h.b16 %v364
    %v1487 = vunpack.c.l.b16 %v365
    %v1488 = vunpack.c.h.b16 %v365
    %v1489 = vunpack.c.l.b16 %v366
    %v1490 = vunpack.c.h.b16 %v366
    %v1491 = vunpack.c.l.b16 %v367
    %v1492 = vunpack.c.h.b16 %v367
    %v1493 = vunpack.c.l.b16 %v368
    %v1494 = vunpack.c.h.b16 %v368
    %v1495 = vunpack.c.l.b16 %v369
    %v1496 = vunpack.c.h.b16 %v369
    %v1497 = vunpack.c.l.b16 %v370
    %v1498 = vunpack.c.h.b16 %v370
    %v1499 = vunpack.c.l.b16 %v371
    %v1500 = vunpack.c.h.b16 %v371
    %v1501 = vunpack.c.l.b16 %v372
    %v1502 = vunpack.c.h.b16 %v372
    %v1503 = vunpack.c.l.b16 %v373
    %v1504 = vunpack.c.h.b16 %v373
    %v1505 = vunpack.c.l.b16 %v374
    %v1506 = vunpack.c.h.b16 %v374
    %v1507 = vunpack.c.l.b16 %v375
    %v1508 = vunpack.c.h.b16 %v375
    %v1509 = vunpack.c.l.b16 %v376
    %v1510 = vunpack.c.h.b16 %v376
    %v1511 = vunpack.c.l.b16 %v377
    %v1512 = vunpack.c.h.b16 %v377
    %v1513 = vunpack.c.l.b16 %v378
    %v1514 = vunpack.c.h.b16 %v378
    %v1515 = vunpack.c.l.b16 %v379
    %v1516 = vunpack.c.h.b16 %v379
    %v1517 = vunpack.c.l.b16 %v380
    %v1518 = vunpack.c.h.b16 %v380
    %v1519 = vunpack.c.l.b16 %v381
    %v1520 = vunpack.c.h.b16 %v381
    %v1521 = vunpack.c.l.b16 %v382
    %v1522 = vunpack.c.h.b16 %v382
    %v1523 = vunpack.c.l.b16 %v383
    %v1524 = vunpack.c.h.b16 %v383
    %v1525 = vunpack.c.l.b16 %v384
    %v1526 = vunpack.c.h.b16 %v384
    %v1527 = vunpack.c.l.b16 %v385
    %v1528 = vunpack.c.h.b16 %v385
    %v1529 = vunpack.c.l.b16 %v386
    %v1530 = vunpack.c.h.b16 %v386
    %v1531 = vunpack.c.l.b16 %v387
    %v1532 = vunpack.c.h.b16 %v387
    %v1533 = vunpack.c.l.b16 %v388
    %v1534 = vunpack.c.h.b16 %v388
    %v1535 = vunpack.c.l.b16 %v389
    %v1536 = vunpack.c.h.b16 %v389
    %v1537 = vunpack.c.l.b16 %v390
    %v1538 = vunpack.c.h.b16 %v390
    %v1539 = vunpack.c.l.b16 %v391
    %v1540 = vunpack.c.h.b16 %v391
    %v1541 = vunpack.c.l.b16 %v392
    %v1542 = vunpack.c.h.b16 %v392
    %v1543 = vunpack.c.l.b16 %v393
    %v1544 = vunpack.c.h.b16 %v393
    %v1545 = vunpack.c.l.b16 %v394
    %v1546 = vunpack.c.h.b16 %v394
    %v1547 = vunpack.c.l.b16 %v395
    %v1548 = vunpack.c.h.b16 %v395
    %v1549 = vunpack.c.l.b16 %v396
    %v1550 = vunpack.c.h.b16 %v396
    %v1551 = vunpack.c.l.b16 %v397
    %v1552 = vunpack.c.h.b16 %v397
    %v1553 = vunpack.c.l.b16 %v398
    %v1554 = vunpack.c.h.b16 %v398
    %v1555 = vunpack.c.l.b16 %v399
    %v1556 = vunpack.c.h.b16 %v399
    %v1557 = vunpack.c.l.b16 %v400
    %v1558 = vunpack.c.h.b16 %v400
    %v1559 = vunpack.c.l.b16 %v401
    %v1560 = vunpack.c.h.b16 %v401
    %v1561 = vunpack.c.l.b16 %v402
    %v1562 = vunpack.c.h.b16 %v402
    %v1563 = vunpack.c.l.b16 %v403
    %v1564 = vunpack.c.h.b16 %v403
    %v1565 = vunpack.c.l.b16 %v404
    %v1566 = vunpack.c.h.b16 %v404
    %v1567 = vunpack.c.l.b16 %v405
    %v1568 = vunpack.c.h.b16 %v405
    %v1569 = vunpack.c.l.b16 %v406
    %v1570 = vunpack.c.h.b16 %v406
    %v1571 = vunpack.c.l.b16 %v407
    %v1572 = vunpack.c.h.b16 %v407
    %v1573 = vunpack.c.l.b16 %v408
    %v1574 = vunpack.c.h.b16 %v408
    %v1575 = vunpack.c.l.b16 %v409
    %v1576 = vunpack.c.h.b16 %v409
    %v1577 = vunpack.c.l.b16 %v410
    %v1578 = vunpack.c.h.b16 %v410
    %v1579 = vunpack.c.l.b16 %v411
    %v1580 = vunpack.c.h.b16 %v411
    %v1581 = vunpack.c.l.b16 %v412
    %v1582 = vunpack.c.h.b16 %v412
    %v1583 = vunpack.c.l.b16 %v413
    %v1584 = vunpack.c.h.b16 %v413
    %v1585 = vunpack.c.l.b16 %v414
    %v1586 = vunpack.c.h.b16 %v414
    %v1587 = vunpack.c.l.b16 %v415
    %v1588 = vunpack.c.h.b16 %v415
    %v1589 = vunpack.c.l.b16 %v416
    %v1590 = vunpack.c.h.b16 %v416
    %v1591 = vunpack.c.l.b16 %v417
    %v1592 = vunpack.c.h.b16 %v417
    %v1593 = vunpack.c.l.b16 %v418
    %v1594 = vunpack.c.h.b16 %v418
    %v1595 = vunpack.c.l.b16 %v419
    %v1596 = vunpack.c.h.b16 %v419
    %v1597 = vunpack.c.l.b16 %v420
    %v1598 = vunpack.c.h.b16 %v420
    %v1599 = vunpack.c.l.b16 %v421
    %v1600 = vunpack.c.h.b16 %v421
    %v1601 = vunpack.c.l.b16 %v422
    %v1602 = vunpack.c.h.b16 %v422
    %v1603 = vunpack.c.l.b16 %v423
    %v1604 = vunpack.c.h.b16 %v423
    %v1605 = vunpack.c.l.b16 %v424
    %v1606 = vunpack.c.h.b16 %v424
    %v1607 = vunpack.c.l.b16 %v425
    %v1608 = vunpack.c.h.b16 %v425
    %v1609 = vunpack.c.l.b16 %v426
    %v1610 = vunpack.c.h.b16 %v426
    %v1611 = vunpack.c.l.b16 %v427
    %v1612 = vunpack.c.h.b16 %v427
    %v1613 = vunpack.c.l.b16 %v428
    %v1614 = vunpack.c.h.b16 %v428
    %v1615 = vunpack.c.l.b16 %v429
    %v1616 = vunpack.c.h.b16 %v429
    %v1617 = vunpack.c.l.b16 %v430
    %v1618 = vunpack.c.h.b16 %v430
    %v1619 = vunpack.c.l.b16 %v431
    %v1620 = vunpack.c.h.b16 %v431
    %v1621 = vunpack.c.l.b16 %v432
    %v1622 = vunpack.c.h.b16 %v432
    %v1623 = vunpack.c.l.b16 %v433
    %v1624 = vunpack.c.h.b16 %v433
    %v1625 = vunpack.c.l.b16 %v434
    %v1626 = vunpack.c.h.b16 %v434
    %v1627 = vunpack.c.l.b16 %v435
    %v1628 = vunpack.c.h.b16 %v435
    %v1629 = vunpack.c.l.b16 %v436
    %v1630 = vunpack.c.h.b16 %v436
    %v1631 = vunpack.c.l.b16 %v437
    %v1632 = vunpack.c.h.b16 %v437
    %v1633 = vunpack.c.l.b16 %v438
    %v1634 = vunpack.c.h.b16 %v438
    %v1635 = vunpack.c.l.b16 %v439
    %v1636 = vunpack.c.h.b16 %v439
    %v1637 = vunpack.c.l.b16 %v440
    %v1638 = vunpack.c.h.b16 %v440
    %v1639 = vunpack.c.l.b16 %v441
    %v1640 = vunpack.c.h.b16 %v441
    %v1641 = vunpack.c.l.b16 %v442
    %v1642 = vunpack.c.h.b16 %v442
    %v1643 = vunpack.c.l.b16 %v443
    %v1644 = vunpack.c.h.b16 %v443
    %v1645 = vunpack.c.l.b16 %v444
    %v1646 = vunpack.c.h.b16 %v444
    %v1647 = vunpack.c.l.b16 %v445
    %v1648 = vunpack.c.h.b16 %v445
    %v1649 = vunpack.c.l.b16 %v446
    %v1650 = vunpack.c.h.b16 %v446
    %v1651 = vunpack.c.l.b16 %v447
    %v1652 = vunpack.c.h.b16 %v447
    %v1653 = vunpack.c.l.b16 %v448
    %v1654 = vunpack.c.h.b16 %v448
    %v1655 = vunpack.c.l.b16 %v449
    %v1656 = vunpack.c.h.b16 %v449
    %v1657 = vunpack.c.l.b16 %v450
    %v1658 = vunpack.c.h.b16 %v450
    %v1659 = vunpack.c.l.b16 %v451
    %v1660 = vunpack.c.h.b16 %v451
    %v1661 = vunpack.c.l.b16 %v452
    %v1662 = vunpack.c.h.b16 %v452
    %v1663 = vunpack.c.l.b16 %v453
    %v1664 = vunpack.c.h.b16 %v453
    %v1665 = vunpack.c.l.b16 %v454
    %v1666 = vunpack.c.h.b16 %v454
    %v1667 = vunpack.c.l.b16 %v455
    %v1668 = vunpack.c.h.b16 %v455
    %v1669 = vunpack.c.l.b16 %v456
    %v1670 = vunpack.c.h.b16 %v456
    %v1671 = vunpack.c.l.b16 %v457
    %v1672 = vunpack.c.h.b16 %v457
    %v1673 = vpack.c.b16 %v913, %v905
    %v1674 = vpack.c.b16 %v914, %v906
    %v1675 = vpack.c.b16 %v915, %v907
    %v1676 = vpack.c.b16 %v916, %v908
    %v1677 = vpack.c.b16 %v917, %v909
    %v1678 = vpack.c.b16 %v918, %v910
    %v1679 = vpack.c.b16 %v919, %v911
    %v1680 = vpack.c.b16 %v920, %v912
    %v1681 = vpack.c.b16 %v929, %v921
    %v1682 = vpack.c.b16 %v930, %v922
    %v1683 = vpack.c.b16 %v931, %v923
    %v1684 = vpack.c.b16 %v932, %v924
    %v1685 = vpack.c.b16 %v933, %v925
    %v1686 = vpack.c.b16 %v934, %v926
    %v1687 = vpack.c.b16 %v935, %v927
    %v1688 = vpack.c.b16 %v936, %v928
    %v1689 = vpack.c.b16 %v945, %v937
    %v1690 = vpack.c.b16 %v946, %v938
    %v1691 = vpack.c.b16 %v947, %v939
    %v1692 = vpack.c.b16 %v948, %v940
    %v1693 = vpack.c.b16 %v949, %v941
    %v1694 = vpack.c.b16 %v950, %v942
    %v1695 = vpack.c.b16 %v951, %v943
    %v1696 = vpack.c.b16 %v952, %v944
    %v1697 = vpack.c.b16 %v961, %v953
    %v1698 = vpack.c.b16 %v962, %v954
    %v1699 = vpack.c.b16 %v963, %v955
    %v1700 = vpack.c.b16 %v964, %v956
    %v1701 = vpack.c.b16 %v965, %v957
    %v1702 = vpack.c.b16 %v966, %v958
    %v1703 = vpack.c.b16 %v967, %v959
    %v1704 = vpack.c.b16 %v968, %v960
    %v1705 = vpack.c.b16 %v977, %v969
    %v1706 = vpack.c.b16 %v978, %v970
    %v1707 = vpack.c.b16 %v979, %v971
    %v1708 = vpack.c.b16 %v980, %v972
    %v1709 = vpack.c.b16 %v981, %v973
    %v1710 = vpack.c.b16 %v982, %v974
    %v1711 = vpack.c.b16 %v983, %v975
    %v1712 = vpack.c.b16 %v984, %v976
    %v1713 = vpack.c.b16 %v993, %v985
    %v1714 = vpack.c.b16 %v994, %v986
    %v1715 = vpack.c.b16 %v995, %v987
    %v1716 = vpack.c.b16 %v996, %v988
    %v1717 = vpack.c.b16 %v997, %v989
    %v1718 = vpack.c.b16 %v998, %v990
    %v1719 = vpack.c.b16 %v999, %v991
    %v1720 = vpack.c.b16 %v1000, %v992
    %v1721 = vpack.c.b16 %v1009, %v1001
    %v1722 = vpack.c.b16 %v1010, %v1002
    %v1723 = vpack.c.b16 %v1011, %v1003
    %v1724 = vpack.c.b16 %v1012, %v1004
    %v1725 = vpack.c.b16 %v1013, %v1005
    %v1726 = vpack.c.b16 %v1014, %v1006
    %v1727 = vpack.c.b16 %v1015, %v1007
    %v1728 = vpack.c.b16 %v1016, %v1008
    %v1729 = vpack.c.b16 %v1025, %v1017
    %v1730 = vpack.c.b16 %v1026, %v1018
    %v1731 = vpack.c.b16 %v1027, %v1019
    %v1732 = vpack.c.b16 %v1028, %v1020
    %v1733 = vpack.c.b16 %v1029, %v1021
    %v1734 = vpack.c.b16 %v1030, %v1022
    %v1735 = vpack.c.b16 %v1031, %v1023
    %v1736 = vpack.c.b16 %v1032, %v1024
    %v1737 = vpack.c.b16 %v1041, %v1033
    %v1738 = vpack.c.b16 %v1042, %v1034
    %v1739 = vpack.c.b16 %v1043, %v1035
    %v1740 = vpack.c.b16 %v1044, %v1036
    %v1741 = vpack.c.b16 %v1045, %v1037
    %v1742 = vpack.c.b16 %v1046, %v1038
    %v1743 = vpack.c.b16 %v1047, %v1039
    %v1744 = vpack.c.b16 %v1048, %v1040
    %v1745 = vpack.c.b16 %v1057, %v1049
    %v1746 = vpack.c.b16 %v1058, %v1050
    %v1747 = vpack.c.b16 %v1059, %v1051
    %v1748 = vpack.c.b16 %v1060, %v1052
    %v1749 = vpack.c.b16 %v1061, %v1053
    %v1750 = vpack.c.b16 %v1062, %v1054
    %v1751 = vpack.c.b16 %v1063, %v1055
    %v1752 = vpack.c.b16 %v1064, %v1056
    %v1753 = vpack.c.b16 %v1073, %v1065
    %v1754 = vpack.c.b16 %v1074, %v1066
    %v1755 = vpack.c.b16 %v1075, %v1067
    %v1756 = vpack.c.b16 %v1076, %v1068
    %v1757 = vpack.c.b16 %v1077, %v1069
    %v1758 = vpack.c.b16 %v1078, %v1070
    %v1759 = vpack.c.b16 %v1079, %v1071
    %v1760 = vpack.c.b16 %v1080, %v1072
    %v1761 = vpack.c.b16 %v1089, %v1081
    %v1762 = vpack.c.b16 %v1090, %v1082
    %v1763 = vpack.c.b16 %v1091, %v1083
    %v1764 = vpack.c.b16 %v1092, %v1084
    %v1765 = vpack.c.b16 %v1093, %v1085
    %v1766 = vpack.c.b16 %v1094, %v1086
    %v1767 = vpack.c.b16 %v1095, %v1087
    %v1768 = vpack.c.b16 %v1096, %v1088
    %v1769 = vpack.c.b16 %v1105, %v1097
    %v1770 = vpack.c.b16 %v1106, %v1098
    %v1771 = vpack.c.b16 %v1107, %v1099
    %v1772 = vpack.c.b16 %v1108, %v1100
    %v1773 = vpack.c.b16 %v1109, %v1101
    %v1774 = vpack.c.b16 %v1110, %v1102
    %v1775 = vpack.c.b16 %v1111, %v1103
    %v1776 = vpack.c.b16 %v1112, %v1104
    %v1777 = vpack.c.b16 %v1121, %v1113
    %v1778 = vpack.c.b16 %v1122, %v1114
    %v1779 = vpack.c.b16 %v1123, %v1115
    %v1780 = vpack.c.b16 %v1124, %v1116
    %v1781 = vpack.c.b16 %v1125, %v1117
    %v1782 = vpack.c.b16 %v1126, %v1118
    %v1783 = vpack.c.b16 %v1127, %v1119
    %v1784 = vpack.c.b16 %v1128, %v1120
    %v1785 = vpack.c.b16 %v1137, %v1129
    %v1786 = vpack.c.b16 %v1138, %v1130
    %v1787 = vpack.c.b16 %v1139, %v1131
    %v1788 = vpack.c.b16 %v1140, %v1132
    %v1789 = vpack.c.b16 %v1141, %v1133
    %v1790 = vpack.c.b16 %v1142, %v1134
    %v1791 = vpack.c.b16 %v1143, %v1135
    %v1792 = vpack.c.b16 %v1144, %v1136
    %v1793 = vpack.c.b16 %v1153, %v1145
    %v1794 = vpack.c.b16 %v1154, %v1146
    %v1795 = vpack.c.b16 %v1155, %v1147
    %v1796 = vpack.c.b16 %v1156, %v1148
    %v1797 = vpack.c.b16 %v1157, %v1149
    %v1798 = vpack.c.b16 %v1158, %v1150
    %v1799 = vpack.c.b16 %v1159, %v1151
    %v1800 = vpack.c.b16 %v1160, %v1152
    %v1801 = vpack.c.b16 %v1169, %v1161
    %v1802 = vpack.c.b16 %v1170, %v1162
    %v1803 = vpack.c.b16 %v1171, %v1163
    %v1804 = vpack.c.b16 %v1172, %v1164
    %v1805 = vpack.c.b16 %v1173, %v1165
    %v1806 = vpack.c.b16 %v1174, %v1166
    %v1807 = vpack.c.b16 %v1175, %v1167
    %v1808 = vpack.c.b16 %v1176, %v1168
    %v1809 = vpack.c.b16 %v1185, %v1177
    %v1810 = vpack.c.b16 %v1186, %v1178
    %v1811 = vpack.c.b16 %v1187, %v1179
    %v1812 = vpack.c.b16 %v1188, %v1180
    %v1813 = vpack.c.b16 %v1189, %v1181
    %v1814 = vpack.c.b16 %v1190, %v1182
    %v1815 = vpack.c.b16 %v1191, %v1183
    %v1816 = vpack.c.b16 %v1192, %v1184
    %v1817 = vpack.c.b16 %v1201, %v1193
    %v1818 = vpack.c.b16 %v1202, %v1194
    %v1819 = vpack.c.b16 %v1203, %v1195
    %v1820 = vpack.c.b16 %v1204, %v1196
    %v1821 = vpack.c.b16 %v1205, %v1197
    %v1822 = vpack.c.b16 %v1206, %v1198
    %v1823 = vpack.c.b16 %v1207, %v1199
    %v1824 = vpack.c.b16 %v1208, %v1200
    %v1825 = vpack.c.b16 %v1217, %v1209
    %v1826 = vpack.c.b16 %v1218, %v1210
    %v1827 = vpack.c.b16 %v1219, %v1211
    %v1828 = vpack.c.b16 %v1220, %v1212
    %v1829 = vpack.c.b16 %v1221, %v1213
    %v1830 = vpack.c.b16 %v1222, %v1214
    %v1831 = vpack.c.b16 %v1223, %v1215
    %v1832 = vpack.c.b16 %v1224, %v1216
    %v1833 = vpack.c.b16 %v1233, %v1225
    %v1834 = vpack.c.b16 %v1234, %v1226
    %v1835 = vpack.c.b16 %v1235, %v1227
    %v1836 = vpack.c.b16 %v1236, %v1228
    %v1837 = vpack.c.b16 %v1237, %v1229
    %v1838 = vpack.c.b16 %v1238, %v1230
    %v1839 = vpack.c.b16 %v1239, %v1231
    %v1840 = vpack.c.b16 %v1240, %v1232
    %v1841 = vpack.c.b16 %v1249, %v1241
    %v1842 = vpack.c.b16 %v1250, %v1242
    %v1843 = vpack.c.b16 %v1251, %v1243
    %v1844 = vpack.c.b16 %v1252, %v1244
    %v1845 = vpack.c.b16 %v1253, %v1245
    %v1846 = vpack.c.b16 %v1254, %v1246
    %v1847 = vpack.c.b16 %v1255, %v1247
    %v1848 = vpack.c.b16 %v1256, %v1248
    %v1849 = vpack.c.b16 %v1265, %v1257
    %v1850 = vpack.c.b16 %v1266, %v1258
    %v1851 = vpack.c.b16 %v1267, %v1259
    %v1852 = vpack.c.b16 %v1268, %v1260
    %v1853 = vpack.c.b16 %v1269, %v1261
    %v1854 = vpack.c.b16 %v1270, %v1262
    %v1855 = vpack.c.b16 %v1271, %v1263
    %v1856 = vpack.c.b16 %v1272, %v1264
    %v1857 = vpack.c.b16 %v1281, %v1273
    %v1858 = vpack.c.b16 %v1282, %v1274
    %v1859 = vpack.c.b16 %v1283, %v1275
    %v1860 = vpack.c.b16 %v1284, %v1276
    %v1861 = vpack.c.b16 %v1285, %v1277
    %v1862 = vpack.c.b16 %v1286, %v1278
    %v1863 = vpack.c.b16 %v1287, %v1279
    %v1864 = vpack.c.b16 %v1288, %v1280
    %v1865 = vpack.c.b16 %v1297, %v1289
    %v1866 = vpack.c.b16 %v1298, %v1290
    %v1867 = vpack.c.b16 %v1299, %v1291
    %v1868 = vpack.c.b16 %v1300, %v1292
    %v1869 = vpack.c.b16 %v1301, %v1293
    %v1870 = vpack.c.b16 %v1302, %v1294
    %v1871 = vpack.c.b16 %v1303, %v1295
    %v1872 = vpack.c.b16 %v1304, %v1296
    %v1873 = vpack.c.b16 %v1313, %v1305
    %v1874 = vpack.c.b16 %v1314, %v1306
    %v1875 = vpack.c.b16 %v1315, %v1307
    %v1876 = vpack.c.b16 %v1316, %v1308
    %v1877 = vpack.c.b16 %v1317, %v1309
    %v1878 = vpack.c.b16 %v1318, %v1310
    %v1879 = vpack.c.b16 %v1319, %v1311
    %v1880 = vpack.c.b16 %v1320, %v1312
    %v1881 = vpack.c.b16 %v1329, %v1321
    %v1882 = vpack.c.b16 %v1330, %v1322
    %v1883 = vpack.c.b16 %v1331, %v1323
    %v1884 = vpack.c.b16 %v1332, %v1324
    %v1885 = vpack.c.b16 %v1333, %v1325
    %v1886 = vpack.c.b16 %v1334, %v1326
    %v1887 = vpack.c.b16 %v1335, %v1327
    %v1888 = vpack.c.b16 %v1336, %v1328
    %v1889 = vpack.c.b16 %v1345, %v1337
    %v1890 = vpack.c.b16 %v1346, %v1338
    %v1891 = vpack.c.b16 %v1347, %v1339
    %v1892 = vpack.c.b16 %v1348, %v1340
    %v1893 = vpack.c.b16 %v1349, %v1341
    %v1894 = vpack.c.b16 %v1350, %v1342
    %v1895 = vpack.c.b16 %v1351, %v1343
    %v1896 = vpack.c.b16 %v1352, %v1344
    %v1897 = vpack.c.b16 %v1361, %v1353
    %v1898 = vpack.c.b16 %v1362, %v1354
    %v1899 = vpack.c.b16 %v1363, %v1355
    %v1900 = vpack.c.b16 %v1364, %v1356
    %v1901 = vpack.c.b16 %v1365, %v1357
    %v1902 = vpack.c.b16 %v1366, %v1358
    %v1903 = vpack.c.b16 %v1367, %v1359
    %v1904 = vpack.c.b16 %v1368, %v1360
    %v1905 = vpack.c.b16 %v1377, %v1369
    %v1906 = vpack.c.b16 %v1378, %v1370
    %v1907 = vpack.c.b16 %v1379, %v1371
    %v1908 = vpack.c.b16 %v1380, %v1372
    %v1909 = vpack.c.b16 %v1381, %v1373
    %v1910 = vpack.c.b16 %v1382, %v1374
    %v1911 = vpack.c.b16 %v1383, %v1375
    %v1912 = vpack.c.b16 %v1384, %v1376
    %v1913 = vpack.c.b16 %v1393, %v1385
    %v1914 = vpack.c.b16 %v1394, %v1386
    %v1915 = vpack.c.b16 %v1395, %v1387
    %v1916 = vpack.c.b16 %v1396, %v1388
    %v1917 = vpack.c.b16 %v1397, %v1389
    %v1918 = vpack.c.b16 %v1398, %v1390
    %v1919 = vpack.c.b16 %v1399, %v1391
    %v1920 = vpack.c.b16 %v1400, %v1392
    %v1921 = vpack.c.b16 %v1409, %v1401
    %v1922 = vpack.c.b16 %v1410, %v1402
    %v1923 = vpack.c.b16 %v1411, %v1403
    %v1924 = vpack.c.b16 %v1412, %v1404
    %v1925 = vpack.c.b16 %v1413, %v1405
    %v1926 = vpack.c.b16 %v1414, %v1406
    %v1927 = vpack.c.b16 %v1415, %v1407
    %v1928 = vpack.c.b16 %v1416, %v1408
    %v1929 = vpack.c.b16 %v1425, %v1417
    %v1930 = vpack.c.b16 %v1426, %v1418
    %v1931 = vpack.c.b16 %v1427, %v1419
    %v1932 = vpack.c.b16 %v1428, %v1420
    %v1933 = vpack.c.b16 %v1429, %v1421
    %v1934 = vpack.c.b16 %v1430, %v1422
    %v1935 = vpack.c.b16 %v1431, %v1423
    %v1936 = vpack.c.b16 %v1432, %v1424
    %v1937 = vpack.c.b16 %v1441, %v1433
    %v1938 = vpack.c.b16 %v1442, %v1434
    %v1939 = vpack.c.b16 %v1443, %v1435
    %v1940 = vpack.c.b16 %v1444, %v1436
    %v1941 = vpack.c.b16 %v1445, %v1437
    %v1942 = vpack.c.b16 %v1446, %v1438
    %v1943 = vpack.c.b16 %v1447, %v1439
    %v1944 = vpack.c.b16 %v1448, %v1440
    %v1945 = vpack.c.b16 %v1457, %v1449
    %v1946 = vpack.c.b16 %v1458, %v1450
    %v1947 = vpack.c.b16 %v1459, %v1451
    %v1948 = vpack.c.b16 %v1460, %v1452
    %v1949 = vpack.c.b16 %v1461, %v1453
    %v1950 = vpack.c.b16 %v1462, %v1454
    %v1951 = vpack.c.b16 %v1463, %v1455
    %v1952 = vpack.c.b16 %v1464, %v1456
    %v1953 = vpack.c.b16 %v1473, %v1465
    %v1954 = vpack.c.b16 %v1474, %v1466
    %v1955 = vpack.c.b16 %v1475, %v1467
    %v1956 = vpack.c.b16 %v1476, %v1468
    %v1957 = vpack.c.b16 %v1477, %v1469
    %v1958 = vpack.c.b16 %v1478, %v1470
    %v1959 = vpack.c.b16 %v1479, %v1471
    %v1960 = vpack.c.b16 %v1480, %v1472
    %v1961 = vpack.c.b16 %v1489, %v1481
    %v1962 = vpack.c.b16 %v1490, %v1482
    %v1963 = vpack.c.b16 %v1491, %v1483
    %v1964 = vpack.c.b16 %v1492, %v1484
    %v1965 = vpack.c.b16 %v1493, %v1485
    %v1966 = vpack.c.b16 %v1494, %v1486
    %v1967 = vpack.c.b16 %v1495, %v1487
    %v1968 = vpack.c.b16 %v1496, %v1488
    %v1969 = vpack.c.b16 %v1505, %v1497
    %v1970 = vpack.c.b16 %v1506, %v1498
    %v1971 = vpack.c.b16 %v1507, %v1499
    %v1972 = vpack.c.b16 %v1508, %v1500
    %v1973 = vpack.c.b16 %v1509, %v1501
    %v1974 = vpack.c.b16 %v1510, %v1502
    %v1975 = vpack.c.b16 %v1511, %v1503
    %v1976 = vpack.c.b16 %v1512, %v1504
    %v1977 = vpack.c.b16 %v1521, %v1513
    %v1978 = vpack.c.b16 %v1522, %v1514
    %v1979 = vpack.c.b16 %v1523, %v1515
    %v1980 = vpack.c.b16 %v1524, %v1516
    %v1981 = vpack.c.b16 %v1525, %v1517
    %v1982 = vpack.c.b16 %v1526, %v1518
    %v1983 = vpack.c.b16 %v1527, %v1519
    %v1984 = vpack.c.b16 %v1528, %v1520
    %v1985 = vpack.c.b16 %v1537, %v1529
    %v1986 = vpack.c.b16 %v1538, %v1530
    %v1987 = vpack.c.b16 %v1539, %v1531
    %v1988 = vpack.c.b16 %v1540, %v1532
    %v1989 = vpack.c.b16 %v1541, %v1533
    %v1990 = vpack.c.b16 %v1542, %v1534
    %v1991 = vpack.c.b16 %v1543, %v1535
    %v1992 = vpack.c.b16 %v1544, %v1536
    %v1993 = vpack.c.b16 %v1553, %v1545
    %v1994 = vpack.c.b16 %v1554, %v1546
    %v1995 = vpack.c.b16 %v1555, %v1547
    %v1996 = vpack.c.b16 %v1556, %v1548
    %v1997 = vpack.c.b16 %v1557, %v1549
    %v1998 = vpack.c.b16 %v1558, %v1550
    %v1999 = vpack.c.b16 %v1559, %v1551
    %v2000 = vpack.c.b16 %v1560, %v1552
    %v2001 = vpack.c.b16 %v1569, %v1561
    %v2002 = vpack.c.b16 %v1570, %v1562
    %v2003 = vpack.c.b16 %v1571, %v1563
    %v2004 = vpack.c.b16 %v1572, %v1564
    %v2005 = vpack.c.b16 %v1573, %v1565
    %v2006 = vpack.c.b16 %v1574, %v1566
    %v2007 = vpack.c.b16 %v1575, %v1567
    %v2008 = vpack.c.b16 %v1576, %v1568
    %v2009 = vpack.c.b16 %v1585, %v1577
    %v2010 = vpack.c.b16 %v1586, %v1578
    %v2011 = vpack.c.b16 %v1587, %v1579
    %v2012 = vpack.c.b16 %v1588, %v1580
    %v2013 = vpack.c.b16 %v1589, %v1581
    %v2014 = vpack.c.b16 %v1590, %v1582
    %v2015 = vpack.c.b16 %v1591, %v1583
    %v2016 = vpack.c.b16 %v1592, %v1584
    %v2017 = vpack.c.b16 %v1601, %v1593
    %v2018 = vpack.c.b16 %v1602, %v1594
    %v2019 = vpack.c.b16 %v1603, %v1595
    %v2020 = vpack.c.b16 %v1604, %v1596
    %v2021 = vpack.c.b16 %v1605, %v1597
    %v2022 = vpack.c.b16 %v1606, %v1598
    %v2023 = vpack.c.b16 %v1607, %v1599
    %v2024 = vpack.c.b16 %v1608, %v1600
    %v2025 = vpack.c.b16 %v1617, %v1609
    %v2026 = vpack.c.b16 %v1618, %v1610
    %v2027 = vpack.c.b16 %v1619, %v1611
    %v2028 = vpack.c.b16 %v1620, %v1612
    %v2029 = vpack.c.b16 %v1621, %v1613
    %v2030 = vpack.c.b16 %v1622, %v1614
    %v2031 = vpack.c.b16 %v1623, %v1615
    %v2032 = vpack.c.b16 %v1624, %v1616
    %v2033 = vpack.c.b16 %v1633, %v1625
    %v2034 = vpack.c.b16 %v1634, %v1626
    %v2035 = vpack.c.b16 %v1635, %v1627
    %v2036 = vpack.c.b16 %v1636, %v1628
    %v2037 = vpack.c.b16 %v1637, %v1629
    %v2038 = vpack.c.b16 %v1638, %v1630
    %v2039 = vpack.c.b16 %v1639, %v1631
    %v2040 = vpack.c.b16 %v1640, %v1632
    %v2041 = vpack.c.b16 %v1649, %v1641
    %v2042 = vpack.c.b16 %v1650, %v1642
    %v2043 = vpack.c.b16 %v1651, %v1643
    %v2044 = vpack.c.b16 %v1652, %v1644
    %v2045 = vpack.c.b16 %v1653, %v1645
    %v2046 = vpack.c.b16 %v1654, %v1646
    %v2047 = vpack.c.b16 %v1655, %v1647
    %v2048 = vpack.c.b16 %v1656, %v1648
    %v2049 = vpack.c.b16 %v1665, %v1657
    %v2050 = vpack.c.b16 %v1666, %v1658
    %v2051 = vpack.c.b16 %v1667, %v1659
    %v2052 = vpack.c.b16 %v1668, %v1660
    %v2053 = vpack.c.b16 %v1669, %v1661
    %v2054 = vpack.c.b16 %v1670, %v1662
    %v2055 = vpack.c.b16 %v1671, %v1663
    %v2056 = vpack.c.b16 %v1672, %v1664
    %2441 = vmatprep.subr.bf16.mxu0 %v1674
    %2442 = vmatpush1.bf16.msra.mxu0 %v1673
    %2443 = vmatprep.subr.bf16.mxu0 %v1682
    %2444 = vmatpush1.bf16.msra.mxu0 %v1681
    %2445 = vmatprep.subr.bf16.mxu0 %v1690
    %2446 = vmatpush1.bf16.msra.mxu0 %v1689
    %2447 = vmatprep.subr.bf16.mxu0 %v1698
    %2448 = vmatpush1.bf16.msra.mxu0 %v1697
    %2449 = vmatprep.subr.bf16.mxu0 %v1706
    %2450 = vmatpush1.bf16.msra.mxu0 %v1705
    %2451 = vmatprep.subr.bf16.mxu0 %v1714
    %2452 = vmatpush1.bf16.msra.mxu0 %v1713
    %2453 = vmatprep.subr.bf16.mxu0 %v1722
    %2454 = vmatpush1.bf16.msra.mxu0 %v1721
    %2455 = vmatprep.subr.bf16.mxu0 %v1730
    %2456 = vmatpush1.bf16.msra.mxu0 %v1729
    %2457 = vmatprep.subr.bf16.mxu0 %v1738
    %2458 = vmatpush1.bf16.msra.mxu0 %v1737
    %2459 = vmatprep.subr.bf16.mxu0 %v1746
    %2460 = vmatpush1.bf16.msra.mxu0 %v1745
    %2461 = vmatprep.subr.bf16.mxu0 %v1754
    %2462 = vmatpush1.bf16.msra.mxu0 %v1753
    %2463 = vmatprep.subr.bf16.mxu0 %v1762
    %2464 = vmatpush1.bf16.msra.mxu0 %v1761
    %2465 = vmatprep.subr.bf16.mxu0 %v1770
    %2466 = vmatpush1.bf16.msra.mxu0 %v1769
    %2467 = vmatprep.subr.bf16.mxu0 %v1778
    %2468 = vmatpush1.bf16.msra.mxu0 %v1777
    %2469 = vmatprep.subr.bf16.mxu0 %v1786
    %2470 = vmatpush1.bf16.msra.mxu0 %v1785
    %2471 = vmatprep.subr.bf16.mxu0 %v1794
    %2472 = vmatpush1.bf16.msra.mxu0 %v1793
    %2473 = vmatprep.mubr.bf16.mxu0 %v510
    %2474 = vmatmul.mubr.bf16.gmra.mrb[0].mxu0 %v509
    %v2475 = vpop.f32.mrb[0].mxu0
    %v2476 = vadd.f32 %v463, %v2475
    %v2477 = vpop.f32.mrb[0].mxu0
    %v2478 = vadd.f32 %v467, %v2477
    %v2479 = vpop.f32.mrb[0].mxu0
    %v2480 = vpop.f32.mrb[0].mxu0
    %2481 = vdwg.mxu0
    %2482 = vmatprep.subr.bf16.mxu0 %v1802
    %2483 = vmatpush1.bf16.msra.mxu0 %v1801
    %2484 = vmatprep.subr.bf16.mxu0 %v1810
    %2485 = vmatpush1.bf16.msra.mxu0 %v1809
    %2486 = vmatprep.subr.bf16.mxu0 %v1818
    %2487 = vmatpush1.bf16.msra.mxu0 %v1817
    %2488 = vmatprep.subr.bf16.mxu0 %v1826
    %2489 = vmatpush1.bf16.msra.mxu0 %v1825
    %2490 = vmatprep.subr.bf16.mxu0 %v1834
    %2491 = vmatpush1.bf16.msra.mxu0 %v1833
    %2492 = vmatprep.subr.bf16.mxu0 %v1842
    %2493 = vmatpush1.bf16.msra.mxu0 %v1841
    %2494 = vmatprep.subr.bf16.mxu0 %v1850
    %2495 = vmatpush1.bf16.msra.mxu0 %v1849
    %2496 = vmatprep.subr.bf16.mxu0 %v1858
    %2497 = vmatpush1.bf16.msra.mxu0 %v1857
    %2498 = vmatprep.subr.bf16.mxu0 %v1866
    %2499 = vmatpush1.bf16.msra.mxu0 %v1865
    %2500 = vmatprep.subr.bf16.mxu0 %v1874
    %2501 = vmatpush1.bf16.msra.mxu0 %v1873
    %2502 = vmatprep.subr.bf16.mxu0 %v1882
    %2503 = vmatpush1.bf16.msra.mxu0 %v1881
    %2504 = vmatprep.subr.bf16.mxu0 %v1890
    %2505 = vmatpush1.bf16.msra.mxu0 %v1889
    %2506 = vmatprep.subr.bf16.mxu0 %v1898
    %2507 = vmatpush1.bf16.msra.mxu0 %v1897
    %2508 = vmatprep.subr.bf16.mxu0 %v1906
    %2509 = vmatpush1.bf16.msra.mxu0 %v1905
    %2510 = vmatprep.subr.bf16.mxu0 %v1914
    %2511 = vmatpush1.bf16.msra.mxu0 %v1913
    %2512 = vmatprep.subr.bf16.mxu0 %v1922
    %2513 = vmatpush1.bf16.msra.mxu0 %v1921
    %2514 = vmatprep.mubr.bf16.mxu0 %v512
    %2515 = vmatmul.mubr.bf16.gmra.mrb[0].mxu0 %v511
    %v2516 = vpop.f32.mrb[0].mxu0
    %v2517 = vadd.f32 %v2476, %v2516
    %v2518 = vpop.f32.mrb[0].mxu0
    %v2519 = vadd.f32 %v2478, %v2518
    %v2520 = vpop.f32.mrb[0].mxu0
    %v2521 = vpop.f32.mrb[0].mxu0
    %2522 = vdwg.mxu0
    %2523 = vmatprep.subr.bf16.mxu0 %v1930
    %2524 = vmatpush1.bf16.msra.mxu0 %v1929
    %2525 = vmatprep.subr.bf16.mxu0 %v1938
    %2526 = vmatpush1.bf16.msra.mxu0 %v1937
    %2527 = vmatprep.subr.bf16.mxu0 %v1946
    %2528 = vmatpush1.bf16.msra.mxu0 %v1945
    %2529 = vmatprep.subr.bf16.mxu0 %v1954
    %2530 = vmatpush1.bf16.msra.mxu0 %v1953
    %2531 = vmatprep.subr.bf16.mxu0 %v1962
    %2532 = vmatpush1.bf16.msra.mxu0 %v1961
    %2533 = vmatprep.subr.bf16.mxu0 %v1970
    %2534 = vmatpush1.bf16.msra.mxu0 %v1969
    %2535 = vmatprep.subr.bf16.mxu0 %v1978
    %2536 = vmatpush1.bf16.msra.mxu0 %v1977
    %2537 = vmatprep.subr.bf16.mxu0 %v1986
    %2538 = vmatpush1.bf16.msra.mxu0 %v1985
    %2539 = vmatprep.subr.bf16.mxu0 %v1994
    %2540 = vmatpush1.bf16.msra.mxu0 %v1993
    %2541 = vmatprep.subr.bf16.mxu0 %v2002
    %2542 = vmatpush1.bf16.msra.mxu0 %v2001
    %2543 = vmatprep.subr.bf16.mxu0 %v2010
    %2544 = vmatpush1.bf16.msra.mxu0 %v2009
    %2545 = vmatprep.subr.bf16.mxu0 %v2018
    %2546 = vmatpush1.bf16.msra.mxu0 %v2017
    %2547 = vmatprep.subr.bf16.mxu0 %v2026
    %2548 = vmatpush1.bf16.msra.mxu0 %v2025
    %2549 = vmatprep.subr.bf16.mxu0 %v2034
    %2550 = vmatpush1.bf16.msra.mxu0 %v2033
    %2551 = vmatprep.subr.bf16.mxu0 %v2042
    %2552 = vmatpush1.bf16.msra.mxu0 %v2041
    %2553 = vmatprep.subr.bf16.mxu0 %v2050
    %2554 = vmatpush1.bf16.msra.mxu0 %v2049
    %2555 = vmatprep.mubr.bf16.mxu0 %v514
    %2556 = vmatmul.mubr.bf16.gmra.mrb[0].mxu0 %v513
    %v2557 = vpop.f32.mrb[0].mxu0
    %v2558 = vadd.f32 %v2517, %v2557
    %v2559 = vpop.f32.mrb[0].mxu0
    %v2560 = vadd.f32 %v2519, %v2559
    %v2561 = vpop.f32.mrb[0].mxu0
    %v2562 = vpop.f32.mrb[0].mxu0
    %2563 = vdwg.mxu0
    %2564 = vmatprep.subr.bf16.mxu0 %v1676
    %2565 = vmatpush1.bf16.msra.mxu0 %v1675
    %2566 = vmatprep.subr.bf16.mxu0 %v1684
    %2567 = vmatpush1.bf16.msra.mxu0 %v1683
    %2568 = vmatprep.subr.bf16.mxu0 %v1692
    %2569 = vmatpush1.bf16.msra.mxu0 %v1691
    %2570 = vmatprep.subr.bf16.mxu0 %v1700
    %2571 = vmatpush1.bf16.msra.mxu0 %v1699
    %2572 = vmatprep.subr.bf16.mxu0 %v1708
    %2573 = vmatpush1.bf16.msra.mxu0 %v1707
    %2574 = vmatprep.subr.bf16.mxu0 %v1716
    %2575 = vmatpush1.bf16.msra.mxu0 %v1715
    %2576 = vmatprep.subr.bf16.mxu0 %v1724
    %2577 = vmatpush1.bf16.msra.mxu0 %v1723
    %2578 = vmatprep.subr.bf16.mxu0 %v1732
    %2579 = vmatpush1.bf16.msra.mxu0 %v1731
    %2580 = vmatprep.subr.bf16.mxu0 %v1740
    %2581 = vmatpush1.bf16.msra.mxu0 %v1739
    %2582 = vmatprep.subr.bf16.mxu0 %v1748
    %2583 = vmatpush1.bf16.msra.mxu0 %v1747
    %2584 = vmatprep.subr.bf16.mxu0 %v1756
    %2585 = vmatpush1.bf16.msra.mxu0 %v1755
    %2586 = vmatprep.subr.bf16.mxu0 %v1764
    %2587 = vmatpush1.bf16.msra.mxu0 %v1763
    %2588 = vmatprep.subr.bf16.mxu0 %v1772
    %2589 = vmatpush1.bf16.msra.mxu0 %v1771
    %2590 = vmatprep.subr.bf16.mxu0 %v1780
    %2591 = vmatpush1.bf16.msra.mxu0 %v1779
    %2592 = vmatprep.subr.bf16.mxu0 %v1788
    %2593 = vmatpush1.bf16.msra.mxu0 %v1787
    %2594 = vmatprep.subr.bf16.mxu0 %v1796
    %2595 = vmatpush1.bf16.msra.mxu0 %v1795
    %2596 = vmatprep.mubr.bf16.mxu0 %v510
    %2597 = vmatmul.mubr.bf16.gmra.mrb[0].mxu0 %v509
    %v2598 = vpop.f32.mrb[0].mxu0
    %v2599 = vadd.f32 %v471, %v2598
    %v2600 = vpop.f32.mrb[0].mxu0
    %v2601 = vadd.f32 %v475, %v2600
    %v2602 = vpop.f32.mrb[0].mxu0
    %v2603 = vpop.f32.mrb[0].mxu0
    %2604 = vdwg.mxu0
    %2605 = vmatprep.subr.bf16.mxu0 %v1804
    %2606 = vmatpush1.bf16.msra.mxu0 %v1803
    %2607 = vmatprep.subr.bf16.mxu0 %v1812
    %2608 = vmatpush1.bf16.msra.mxu0 %v1811
    %2609 = vmatprep.subr.bf16.mxu0 %v1820
    %2610 = vmatpush1.bf16.msra.mxu0 %v1819
    %2611 = vmatprep.subr.bf16.mxu0 %v1828
    %2612 = vmatpush1.bf16.msra.mxu0 %v1827
    %2613 = vmatprep.subr.bf16.mxu0 %v1836
    %2614 = vmatpush1.bf16.msra.mxu0 %v1835
    %2615 = vmatprep.subr.bf16.mxu0 %v1844
    %2616 = vmatpush1.bf16.msra.mxu0 %v1843
    %2617 = vmatprep.subr.bf16.mxu0 %v1852
    %2618 = vmatpush1.bf16.msra.mxu0 %v1851
    %2619 = vmatprep.subr.bf16.mxu0 %v1860
    %2620 = vmatpush1.bf16.msra.mxu0 %v1859
    %2621 = vmatprep.subr.bf16.mxu0 %v1868
    %2622 = vmatpush1.bf16.msra.mxu0 %v1867
    %2623 = vmatprep.subr.bf16.mxu0 %v1876
    %2624 = vmatpush1.bf16.msra.mxu0 %v1875
    %2625 = vmatprep.subr.bf16.mxu0 %v1884
    %2626 = vmatpush1.bf16.msra.mxu0 %v1883
    %2627 = vmatprep.subr.bf16.mxu0 %v1892
    %2628 = vmatpush1.bf16.msra.mxu0 %v1891
    %2629 = vmatprep.subr.bf16.mxu0 %v1900
    %2630 = vmatpush1.bf16.msra.mxu0 %v1899
    %2631 = vmatprep.subr.bf16.mxu0 %v1908
    %2632 = vmatpush1.bf16.msra.mxu0 %v1907
    %2633 = vmatprep.subr.bf16.mxu0 %v1916
    %2634 = vmatpush1.bf16.msra.mxu0 %v1915
    %2635 = vmatprep.subr.bf16.mxu0 %v1924
    %2636 = vmatpush1.bf16.msra.mxu0 %v1923
    %2637 = vmatprep.mubr.bf16.mxu0 %v512
    %2638 = vmatmul.mubr.bf16.gmra.mrb[0].mxu0 %v511
    %v2639 = vpop.f32.mrb[0].mxu0
    %v2640 = vadd.f32 %v2599, %v2639
    %v2641 = vpop.f32.mrb[0].mxu0
    %v2642 = vadd.f32 %v2601, %v2641
    %v2643 = vpop.f32.mrb[0].mxu0
    %v2644 = vpop.f32.mrb[0].mxu0
    %2645 = vdwg.mxu0
    %2646 = vmatprep.subr.bf16.mxu0 %v1932
    %2647 = vmatpush1.bf16.msra.mxu0 %v1931
    %2648 = vmatprep.subr.bf16.mxu0 %v1940
    %2649 = vmatpush1.bf16.msra.mxu0 %v1939
    %2650 = vmatprep.subr.bf16.mxu0 %v1948
    %2651 = vmatpush1.bf16.msra.mxu0 %v1947
    %2652 = vmatprep.subr.bf16.mxu0 %v1956
    %2653 = vmatpush1.bf16.msra.mxu0 %v1955
    %2654 = vmatprep.subr.bf16.mxu0 %v1964
    %2655 = vmatpush1.bf16.msra.mxu0 %v1963
    %2656 = vmatprep.subr.bf16.mxu0 %v1972
    %2657 = vmatpush1.bf16.msra.mxu0 %v1971
    %2658 = vmatprep.subr.bf16.mxu0 %v1980
    %2659 = vmatpush1.bf16.msra.mxu0 %v1979
    %2660 = vmatprep.subr.bf16.mxu0 %v1988
    %2661 = vmatpush1.bf16.msra.mxu0 %v1987
    %2662 = vmatprep.subr.bf16.mxu0 %v1996
    %2663 = vmatpush1.bf16.msra.mxu0 %v1995
    %2664 = vmatprep.subr.bf16.mxu0 %v2004
    %2665 = vmatpush1.bf16.msra.mxu0 %v2003
    %2666 = vmatprep.subr.bf16.mxu0 %v2012
    %2667 = vmatpush1.bf16.msra.mxu0 %v2011
    %2668 = vmatprep.subr.bf16.mxu0 %v2020
    %2669 = vmatpush1.bf16.msra.mxu0 %v2019
    %2670 = vmatprep.subr.bf16.mxu0 %v2028
    %2671 = vmatpush1.bf16.msra.mxu0 %v2027
    %2672 = vmatprep.subr.bf16.mxu0 %v2036
    %2673 = vmatpush1.bf16.msra.mxu0 %v2035
    %2674 = vmatprep.subr.bf16.mxu0 %v2044
    %2675 = vmatpush1.bf16.msra.mxu0 %v2043
    %2676 = vmatprep.subr.bf16.mxu0 %v2052
    %2677 = vmatpush1.bf16.msra.mxu0 %v2051
    %2678 = vmatprep.mubr.bf16.mxu0 %v514
    %2679 = vmatmul.mubr.bf16.gmra.mrb[0].mxu0 %v513
    %v2680 = vpop.f32.mrb[0].mxu0
    %v2681 = vadd.f32 %v2640, %v2680
    %v2682 = vpop.f32.mrb[0].mxu0
    %v2683 = vadd.f32 %v2642, %v2682
    %v2684 = vpop.f32.mrb[0].mxu0
    %v2685 = vpop.f32.mrb[0].mxu0
    %2686 = vdwg.mxu0
    %2687 = vmatprep.subr.bf16.mxu0 %v1678
    %2688 = vmatpush1.bf16.msra.mxu0 %v1677
    %2689 = vmatprep.subr.bf16.mxu0 %v1686
    %2690 = vmatpush1.bf16.msra.mxu0 %v1685
    %2691 = vmatprep.subr.bf16.mxu0 %v1694
    %2692 = vmatpush1.bf16.msra.mxu0 %v1693
    %2693 = vmatprep.subr.bf16.mxu0 %v1702
    %2694 = vmatpush1.bf16.msra.mxu0 %v1701
    %2695 = vmatprep.subr.bf16.mxu0 %v1710
    %2696 = vmatpush1.bf16.msra.mxu0 %v1709
    %2697 = vmatprep.subr.bf16.mxu0 %v1718
    %2698 = vmatpush1.bf16.msra.mxu0 %v1717
    %2699 = vmatprep.subr.bf16.mxu0 %v1726
    %2700 = vmatpush1.bf16.msra.mxu0 %v1725
    %2701 = vmatprep.subr.bf16.mxu0 %v1734
    %2702 = vmatpush1.bf16.msra.mxu0 %v1733
    %2703 = vmatprep.subr.bf16.mxu0 %v1742
    %2704 = vmatpush1.bf16.msra.mxu0 %v1741
    %2705 = vmatprep.subr.bf16.mxu0 %v1750
    %2706 = vmatpush1.bf16.msra.mxu0 %v1749
    %2707 = vmatprep.subr.bf16.mxu0 %v1758
    %2708 = vmatpush1.bf16.msra.mxu0 %v1757
    %2709 = vmatprep.subr.bf16.mxu0 %v1766
    %2710 = vmatpush1.bf16.msra.mxu0 %v1765
    %2711 = vmatprep.subr.bf16.mxu0 %v1774
    %2712 = vmatpush1.bf16.msra.mxu0 %v1773
    %2713 = vmatprep.subr.bf16.mxu0 %v1782
    %2714 = vmatpush1.bf16.msra.mxu0 %v1781
    %2715 = vmatprep.subr.bf16.mxu0 %v1790
    %2716 = vmatpush1.bf16.msra.mxu0 %v1789
    %2717 = vmatprep.subr.bf16.mxu0 %v1798
    %2718 = vmatpush1.bf16.msra.mxu0 %v1797
    %2719 = vmatprep.mubr.bf16.mxu0 %v510
    %2720 = vmatmul.mubr.bf16.gmra.mrb[0].mxu0 %v509
    %v2721 = vpop.f32.mrb[0].mxu0
    %v2722 = vadd.f32 %v479, %v2721
    %v2723 = vpop.f32.mrb[0].mxu0
    %v2724 = vadd.f32 %v483, %v2723
    %v2725 = vpop.f32.mrb[0].mxu0
    %v2726 = vpop.f32.mrb[0].mxu0
    %2727 = vdwg.mxu0
    %2728 = vmatprep.subr.bf16.mxu0 %v1806
    %2729 = vmatpush1.bf16.msra.mxu0 %v1805
    %2730 = vmatprep.subr.bf16.mxu0 %v1814
    %2731 = vmatpush1.bf16.msra.mxu0 %v1813
    %2732 = vmatprep.subr.bf16.mxu0 %v1822
    %2733 = vmatpush1.bf16.msra.mxu0 %v1821
    %2734 = vmatprep.subr.bf16.mxu0 %v1830
    %2735 = vmatpush1.bf16.msra.mxu0 %v1829
    %2736 = vmatprep.subr.bf16.mxu0 %v1838
    %2737 = vmatpush1.bf16.msra.mxu0 %v1837
    %2738 = vmatprep.subr.bf16.mxu0 %v1846
    %2739 = vmatpush1.bf16.msra.mxu0 %v1845
    %2740 = vmatprep.subr.bf16.mxu0 %v1854
    %2741 = vmatpush1.bf16.msra.mxu0 %v1853
    %2742 = vmatprep.subr.bf16.mxu0 %v1862
    %2743 = vmatpush1.bf16.msra.mxu0 %v1861
    %2744 = vmatprep.subr.bf16.mxu0 %v1870
    %2745 = vmatpush1.bf16.msra.mxu0 %v1869
    %2746 = vmatprep.subr.bf16.mxu0 %v1878
    %2747 = vmatpush1.bf16.msra.mxu0 %v1877
    %2748 = vmatprep.subr.bf16.mxu0 %v1886
    %2749 = vmatpush1.bf16.msra.mxu0 %v1885
    %2750 = vmatprep.subr.bf16.mxu0 %v1894
    %2751 = vmatpush1.bf16.msra.mxu0 %v1893
    %2752 = vmatprep.subr.bf16.mxu0 %v1902
    %2753 = vmatpush1.bf16.msra.mxu0 %v1901
    %2754 = vmatprep.subr.bf16.mxu0 %v1910
    %2755 = vmatpush1.bf16.msra.mxu0 %v1909
    %2756 = vmatprep.subr.bf16.mxu0 %v1918
    %2757 = vmatpush1.bf16.msra.mxu0 %v1917
    %2758 = vmatprep.subr.bf16.mxu0 %v1926
    %2759 = vmatpush1.bf16.msra.mxu0 %v1925
    %2760 = vmatprep.mubr.bf16.mxu0 %v512
    %2761 = vmatmul.mubr.bf16.gmra.mrb[0].mxu0 %v511
    %v2762 = vpop.f32.mrb[0].mxu0
    %v2763 = vadd.f32 %v2722, %v2762
    %v2764 = vpop.f32.mrb[0].mxu0
    %v2765 = vadd.f32 %v2724, %v2764
    %v2766 = vpop.f32.mrb[0].mxu0
    %v2767 = vpop.f32.mrb[0].mxu0
    %2768 = vdwg.mxu0
    %2769 = vmatprep.subr.bf16.mxu0 %v1934
    %2770 = vmatpush1.bf16.msra.mxu0 %v1933
    %2771 = vmatprep.subr.bf16.mxu0 %v1942
    %2772 = vmatpush1.bf16.msra.mxu0 %v1941
    %2773 = vmatprep.subr.bf16.mxu0 %v1950
    %2774 = vmatpush1.bf16.msra.mxu0 %v1949
    %2775 = vmatprep.subr.bf16.mxu0 %v1958
    %2776 = vmatpush1.bf16.msra.mxu0 %v1957
    %2777 = vmatprep.subr.bf16.mxu0 %v1966
    %2778 = vmatpush1.bf16.msra.mxu0 %v1965
    %2779 = vmatprep.subr.bf16.mxu0 %v1974
    %2780 = vmatpush1.bf16.msra.mxu0 %v1973
    %2781 = vmatprep.subr.bf16.mxu0 %v1982
    %2782 = vmatpush1.bf16.msra.mxu0 %v1981
    %2783 = vmatprep.subr.bf16.mxu0 %v1990
    %2784 = vmatpush1.bf16.msra.mxu0 %v1989
    %2785 = vmatprep.subr.bf16.mxu0 %v1998
    %2786 = vmatpush1.bf16.msra.mxu0 %v1997
    %2787 = vmatprep.subr.bf16.mxu0 %v2006
    %2788 = vmatpush1.bf16.msra.mxu0 %v2005
    %2789 = vmatprep.subr.bf16.mxu0 %v2014
    %2790 = vmatpush1.bf16.msra.mxu0 %v2013
    %2791 = vmatprep.subr.bf16.mxu0 %v2022
    %2792 = vmatpush1.bf16.msra.mxu0 %v2021
    %2793 = vmatprep.subr.bf16.mxu0 %v2030
    %2794 = vmatpush1.bf16.msra.mxu0 %v2029
    %2795 = vmatprep.subr.bf16.mxu0 %v2038
    %2796 = vmatpush1.bf16.msra.mxu0 %v2037
    %2797 = vmatprep.subr.bf16.mxu0 %v2046
    %2798 = vmatpush1.bf16.msra.mxu0 %v2045
    %2799 = vmatprep.subr.bf16.mxu0 %v2054
    %2800 = vmatpush1.bf16.msra.mxu0 %v2053
    %2801 = vmatprep.mubr.bf16.mxu0 %v514
    %2802 = vmatmul.mubr.bf16.gmra.mrb[0].mxu0 %v513
    %v2803 = vpop.f32.mrb[0].mxu0
    %v2804 = vadd.f32 %v2763, %v2803
    %v2805 = vpop.f32.mrb[0].mxu0
    %v2806 = vadd.f32 %v2765, %v2805
    %v2807 = vpop.f32.mrb[0].mxu0
    %v2808 = vpop.f32.mrb[0].mxu0
    %2809 = vdwg.mxu0
    %2810 = vmatprep.subr.bf16.mxu0 %v1680
    %2811 = vmatpush1.bf16.msra.mxu0 %v1679
    %2812 = vmatprep.subr.bf16.mxu0 %v1688
    %2813 = vmatpush1.bf16.msra.mxu0 %v1687
    %2814 = vmatprep.subr.bf16.mxu0 %v1696
    %2815 = vmatpush1.bf16.msra.mxu0 %v1695
    %2816 = vmatprep.subr.bf16.mxu0 %v1704
    %2817 = vmatpush1.bf16.msra.mxu0 %v1703
    %2818 = vmatprep.subr.bf16.mxu0 %v1712
    %2819 = vmatpush1.bf16.msra.mxu0 %v1711
    %2820 = vmatprep.subr.bf16.mxu0 %v1720
    %2821 = vmatpush1.bf16.msra.mxu0 %v1719
    %2822 = vmatprep.subr.bf16.mxu0 %v1728
    %2823 = vmatpush1.bf16.msra.mxu0 %v1727
    %2824 = vmatprep.subr.bf16.mxu0 %v1736
    %2825 = vmatpush1.bf16.msra.mxu0 %v1735
    %2826 = vmatprep.subr.bf16.mxu0 %v1744
    %2827 = vmatpush1.bf16.msra.mxu0 %v1743
    %2828 = vmatprep.subr.bf16.mxu0 %v1752
    %2829 = vmatpush1.bf16.msra.mxu0 %v1751
    %2830 = vmatprep.subr.bf16.mxu0 %v1760
    %2831 = vmatpush1.bf16.msra.mxu0 %v1759
    %2832 = vmatprep.subr.bf16.mxu0 %v1768
    %2833 = vmatpush1.bf16.msra.mxu0 %v1767
    %2834 = vmatprep.subr.bf16.mxu0 %v1776
    %2835 = vmatpush1.bf16.msra.mxu0 %v1775
    %2836 = vmatprep.subr.bf16.mxu0 %v1784
    %2837 = vmatpush1.bf16.msra.mxu0 %v1783
    %2838 = vmatprep.subr.bf16.mxu0 %v1792
    %2839 = vmatpush1.bf16.msra.mxu0 %v1791
    %2840 = vmatprep.subr.bf16.mxu0 %v1800
    %2841 = vmatpush1.bf16.msra.mxu0 %v1799
    %2842 = vmatprep.mubr.bf16.mxu0 %v510
    %2843 = vmatmul.mubr.bf16.gmra.mrb[0].mxu0 %v509
    %v2844 = vpop.f32.mrb[0].mxu0
    %v2845 = vadd.f32 %v487, %v2844
    %v2846 = vpop.f32.mrb[0].mxu0
    %v2847 = vadd.f32 %v491, %v2846
    %v2848 = vpop.f32.mrb[0].mxu0
    %v2849 = vpop.f32.mrb[0].mxu0
    %2850 = vdwg.mxu0
    %2851 = vmatprep.subr.bf16.mxu0 %v1808
    %2852 = vmatpush1.bf16.msra.mxu0 %v1807
    %2853 = vmatprep.subr.bf16.mxu0 %v1816
    %2854 = vmatpush1.bf16.msra.mxu0 %v1815
    %2855 = vmatprep.subr.bf16.mxu0 %v1824
    %2856 = vmatpush1.bf16.msra.mxu0 %v1823
    %2857 = vmatprep.subr.bf16.mxu0 %v1832
    %2858 = vmatpush1.bf16.msra.mxu0 %v1831
    %2859 = vmatprep.subr.bf16.mxu0 %v1840
    %2860 = vmatpush1.bf16.msra.mxu0 %v1839
    %2861 = vmatprep.subr.bf16.mxu0 %v1848
    %2862 = vmatpush1.bf16.msra.mxu0 %v1847
    %2863 = vmatprep.subr.bf16.mxu0 %v1856
    %2864 = vmatpush1.bf16.msra.mxu0 %v1855
    %2865 = vmatprep.subr.bf16.mxu0 %v1864
    %2866 = vmatpush1.bf16.msra.mxu0 %v1863
    %2867 = vmatprep.subr.bf16.mxu0 %v1872
    %2868 = vmatpush1.bf16.msra.mxu0 %v1871
    %2869 = vmatprep.subr.bf16.mxu0 %v1880
    %2870 = vmatpush1.bf16.msra.mxu0 %v1879
    %2871 = vmatprep.subr.bf16.mxu0 %v1888
    %2872 = vmatpush1.bf16.msra.mxu0 %v1887
    %2873 = vmatprep.subr.bf16.mxu0 %v1896
    %2874 = vmatpush1.bf16.msra.mxu0 %v1895
    %2875 = vmatprep.subr.bf16.mxu0 %v1904
    %2876 = vmatpush1.bf16.msra.mxu0 %v1903
    %2877 = vmatprep.subr.bf16.mxu0 %v1912
    %2878 = vmatpush1.bf16.msra.mxu0 %v1911
    %2879 = vmatprep.subr.bf16.mxu0 %v1920
    %2880 = vmatpush1.bf16.msra.mxu0 %v1919
    %2881 = vmatprep.subr.bf16.mxu0 %v1928
    %2882 = vmatpush1.bf16.msra.mxu0 %v1927
    %2883 = vmatprep.mubr.bf16.mxu0 %v512
    %2884 = vmatmul.mubr.bf16.gmra.mrb[0].mxu0 %v511
    %v2885 = vpop.f32.mrb[0].mxu0
    %v2886 = vadd.f32 %v2845, %v2885
    %v2887 = vpop.f32.mrb[0].mxu0
    %v2888 = vadd.f32 %v2847, %v2887
    %v2889 = vpop.f32.mrb[0].mxu0
    %v2890 = vpop.f32.mrb[0].mxu0
    %2891 = vdwg.mxu0
    %2892 = vmatprep.subr.bf16.mxu0 %v1936
    %2893 = vmatpush1.bf16.msra.mxu0 %v1935
    %2894 = vmatprep.subr.bf16.mxu0 %v1944
    %2895 = vmatpush1.bf16.msra.mxu0 %v1943
    %2896 = vmatprep.subr.bf16.mxu0 %v1952
    %2897 = vmatpush1.bf16.msra.mxu0 %v1951
    %2898 = vmatprep.subr.bf16.mxu0 %v1960
    %2899 = vmatpush1.bf16.msra.mxu0 %v1959
    %2900 = vmatprep.subr.bf16.mxu0 %v1968
    %2901 = vmatpush1.bf16.msra.mxu0 %v1967
    %2902 = vmatprep.subr.bf16.mxu0 %v1976
    %2903 = vmatpush1.bf16.msra.mxu0 %v1975
    %2904 = vmatprep.subr.bf16.mxu0 %v1984
    %2905 = vmatpush1.bf16.msra.mxu0 %v1983
    %2906 = vmatprep.subr.bf16.mxu0 %v1992
    %2907 = vmatpush1.bf16.msra.mxu0 %v1991
    %2908 = vmatprep.subr.bf16.mxu0 %v2000
    %2909 = vmatpush1.bf16.msra.mxu0 %v1999
    %2910 = vmatprep.subr.bf16.mxu0 %v2008
    %2911 = vmatpush1.bf16.msra.mxu0 %v2007
    %2912 = vmatprep.subr.bf16.mxu0 %v2016
    %2913 = vmatpush1.bf16.msra.mxu0 %v2015
    %2914 = vmatprep.subr.bf16.mxu0 %v2024
    %2915 = vmatpush1.bf16.msra.mxu0 %v2023
    %2916 = vmatprep.subr.bf16.mxu0 %v2032
    %2917 = vmatpush1.bf16.msra.mxu0 %v2031
    %2918 = vmatprep.subr.bf16.mxu0 %v2040
    %2919 = vmatpush1.bf16.msra.mxu0 %v2039
    %2920 = vmatprep.subr.bf16.mxu0 %v2048
    %2921 = vmatpush1.bf16.msra.mxu0 %v2047
    %2922 = vmatprep.subr.bf16.mxu0 %v2056
    %2923 = vmatpush1.bf16.msra.mxu0 %v2055
    %2924 = vmatprep.mubr.bf16.mxu0 %v514
    %2925 = vmatmul.mubr.bf16.gmra.mrb[0].mxu0 %v513
    %v2926 = vpop.f32.mrb[0].mxu0
    %v2927 = vadd.f32 %v2886, %v2926
    %v2928 = vpop.f32.mrb[0].mxu0
    %v2929 = vadd.f32 %v2888, %v2928
    %v2930 = vpop.f32.mrb[0].mxu0
    %v2931 = vpop.f32.mrb[0].mxu0
    %2932 = vdwg.mxu0
    %v2933 = vxor.u32 %v2558, 2147483648
    %v2934 = vxor.u32 %v2560, 2147483648
    %v2935 = vxor.u32 %v2681, 2147483648
    %v2936 = vxor.u32 %v2683, 2147483648
    %v2937 = vxor.u32 %v2804, 2147483648
    %v2938 = vxor.u32 %v2806, 2147483648
    %v2939 = vxor.u32 %v2927, 2147483648
    %v2940 = vxor.u32 %v2929, 2147483648
    %v2941 = vmul.f32 %v2933, 1.442695
    %v2942 = vpow.pop %v2941
    %v2943 = vmul.f32 %v2934, 1.442695
    %v2944 = vpow.pop %v2943
    %v2945 = vmul.f32 %v2935, 1.442695
    %v2946 = vpow.pop %v2945
    %v2947 = vmul.f32 %v2936, 1.442695
    %v2948 = vpow.pop %v2947
    %v2949 = vmul.f32 %v2937, 1.442695
    %v2950 = vpow.pop %v2949
    %v2951 = vmul.f32 %v2938, 1.442695
    %v2952 = vpow.pop %v2951
    %v2953 = vmul.f32 %v2939, 1.442695
    %v2954 = vpow.pop %v2953
    %v2955 = vmul.f32 %v2940, 1.442695
    %v2956 = vpow.pop %v2955
    %v2957 = vadd.f32 %v2942, 1.0
    %v2958 = vadd.f32 %v2944, 1.0
    %v2959 = vadd.f32 %v2946, 1.0
    %v2960 = vadd.f32 %v2948, 1.0
    %v2961 = vadd.f32 %v2950, 1.0
    %v2962 = vadd.f32 %v2952, 1.0
    %v2963 = vadd.f32 %v2954, 1.0
    %v2964 = vadd.f32 %v2956, 1.0
    %v2965 = vrcp.pop %v2957
    %v2966 = vmul.f32 1.0, %v2965
    %v2967 = vrcp.pop %v2958
    %v2968 = vmul.f32 1.0, %v2967
    %v2969 = vrcp.pop %v2959
    %v2970 = vmul.f32 1.0, %v2969
    %v2971 = vrcp.pop %v2960
    %v2972 = vmul.f32 1.0, %v2971
    %v2973 = vrcp.pop %v2961
    %v2974 = vmul.f32 1.0, %v2973
    %v2975 = vrcp.pop %v2962
    %v2976 = vmul.f32 1.0, %v2975
    %v2977 = vrcp.pop %v2963
    %v2978 = vmul.f32 1.0, %v2977
    %v2979 = vrcp.pop %v2964
    %v2980 = vmul.f32 1.0, %v2979
    %v2981 = vmul.f32 %v2558, %v2966
    %v2982 = vmul.f32 %v2560, %v2968
    %v2983 = vmul.f32 %v2681, %v2970
    %v2984 = vmul.f32 %v2683, %v2972
    %v2985 = vmul.f32 %v2804, %v2974
    %v2986 = vmul.f32 %v2806, %v2976
    %v2987 = vmul.f32 %v2927, %v2978
    %v2988 = vmul.f32 %v2929, %v2980
    %v2989 = vld [vmem:[#allocation8] sm:$0xff]
    %v2991 = vlaneseq
    %v2992 = vshrl.u32 %v2991, 7
    %v2993 = vsub.s32 0, %v2992
    %v2994 = vrot.slane %v2989, %v2993
    %v2995 = vlaneseq
    %v2996 = vshrl.u32 %v2995, 7
    %v2997 = vsub.s32 1, %v2996
    %v2998 = vrot.slane %v2989, %v2997
    %v2999 = vlaneseq
    %v3000 = vshrl.u32 %v2999, 7
    %v3001 = vsub.s32 2, %v3000
    %v3002 = vrot.slane %v2989, %v3001
    %v3003 = vlaneseq
    %v3004 = vshrl.u32 %v3003, 7
    %v3005 = vsub.s32 3, %v3004
    %v3006 = vrot.slane %v2989, %v3005
    %v3007 = vlaneseq
    %v3008 = vshrl.u32 %v3007, 7
    %v3009 = vsub.s32 4, %v3008
    %v3010 = vrot.slane %v2989, %v3009
    %v3011 = vlaneseq
    %v3012 = vshrl.u32 %v3011, 7
    %v3013 = vsub.s32 5, %v3012
    %v3014 = vrot.slane %v2989, %v3013
    %v3015 = vlaneseq
    %v3016 = vshrl.u32 %v3015, 7
    %v3017 = vsub.s32 6, %v3016
    %v3018 = vrot.slane %v2989, %v3017
    %v3019 = vlaneseq
    %v3020 = vshrl.u32 %v3019, 7
    %v3021 = vsub.s32 7, %v3020
    %v3022 = vrot.slane %v2989, %v3021
    %v3031 = vmul.f32 %v2981, %v2994
    %v3032 = vmul.f32 %v2982, %v2998
    %v3033 = vmul.f32 %v2983, %v3002
    %v3034 = vmul.f32 %v2984, %v3006
    %v3035 = vmul.f32 %v2985, %v3010
    %v3036 = vmul.f32 %v2986, %v3014
    %v3037 = vmul.f32 %v2987, %v3018
    %v3038 = vmul.f32 %v2988, %v3022
    %v3039 = vadd.f32 %v3031, %v3032
    %v3040 = vadd.f32 %v3039, %v3033
    %v3041 = vadd.f32 %v3040, %v3034
    %v3042 = vadd.f32 %v3041, %v3035
    %v3043 = vadd.f32 %v3042, %v3036
    %v3044 = vadd.f32 %v3043, %v3037
    %v3045 = vadd.f32 %v3044, %v3038
    %3046 = vadd.xlane.f32.xlu0 %v3045
    %v3047 = vpop.xlane.xlu0 %3046
    %v3048 = vld [vmem:[#allocation2] sm:$0x1]
    %v3050 = vlaneseq
    %v3051 = vshrl.u32 %v3050, 7
    %v3052 = vsub.s32 0, %v3051
    %v3053 = vrot.slane %v3048, %v3052
    %v3055 = vadd.f32 %v3047, %v3053
    %vm3056 = vcmask 7168
    %3057 = vst.msk [vmem:[%s5] sm:$0xff] %vm3056, %v3055
    // Predicated region
    $region38: #{aesthetic_model_forward.1} parent=1 // pred_check
      _
    $region39: #{aesthetic_model_forward.1} parent=1 // pred_check_branch
      %3059 = sbr.rel (0) target = $region41
    $region40: #{aesthetic_model_forward.1} parent=1 // pred_region
      _
    $region41: #{aesthetic_model_forward.1} parent=1 // pred_fallthru
      _
    // Predicated region
    $region42: #{aesthetic_model_forward.1} parent=1 // pred_check
      _
    $region43: #{aesthetic_model_forward.1} parent=1 // pred_check_branch
      %3061 = sbr.rel (0) target = $region45
    $region44: #{aesthetic_model_forward.1} parent=1 // pred_region
      _
    $region45: #{aesthetic_model_forward.1} parent=1 // pred_fallthru
      _
    %3062 = vsyncpa [#allocation4], 1
    %3063 = vsyncpa [#allocation6], 1
    %3064 = vsyncpa [#allocation9], 1

</llo_original>
